<compile_context>
chip_gen: v7x
topology: tpu7x:2x2x1
jax: 0.10.0
libtpu: 0.0.40
codegen_flags: <defaults>
</compile_context>

<pallas_src>
import math

import jax
import jax.numpy as jnp
from jax import lax
from jax.experimental import pallas as pl
from jax.experimental.pallas import tpu as pltpu


# ----------------------------------------------------------------------------
# Fused flash kernel: per (batch, q-tile, kv-tile) — cached Q projection,
# per-head online-softmax attention, per-head output projection + bias fused
# at the final kv step.
# ----------------------------------------------------------------------------
def _make_mha_flash_kernel(n_heads, head_dim):
    H, D = n_heads, head_dim
    # contract the LAST dim of both operands (q @ k^T without a transpose)
    contract_last = (((1,), (1,)), ((), ()))

    def kernel(q_ref, kp_ref, vp_ref, wq_ref, wo_ref, bo_ref, o_ref,
               qp_sc, m_sc, l_sc, acc_sc):
        kv = pl.program_id(2)

        @pl.when(kv == 0)
        def _init():
            # Fused, pre-scaled Q projection — done once per (batch, q-tile)
            # and cached in VMEM scratch so the kv steps don't recompute it.
            qp = jnp.dot(q_ref[0], wq_ref[...],
                         preferred_element_type=jnp.float32)
            qp_sc[...] = qp.astype(qp_sc.dtype)
            m_sc[...] = jnp.full_like(m_sc, -jnp.inf)
            l_sc[...] = jnp.zeros_like(l_sc)
            acc_sc[...] = jnp.zeros_like(acc_sc)

        kp = kp_ref[0]          # (tk, E) pre-projected keys (packed heads)
        vp = vp_ref[0]          # (tk, E) pre-projected values
        qp = qp_sc[...]         # (tq, E) cached, already scaled by 1/sqrt(D)

        # Static unroll over heads; each iteration drains into scratch refs so
        # the live vreg set stays bounded (no growing list / concat).
        for h in range(H):
            lo = h * D
            qh = qp[:, lo:lo + D]                     # (tq, D)
            kh = kp[:, lo:lo + D]                     # (tk, D)
            vh = vp[:, lo:lo + D]                     # (tk, D)

            # logits = qh @ kh^T (scale already folded into wq), no transpose
            s = lax.dot_general(qh, kh, contract_last,
                                preferred_element_type=jnp.float32)

            m_prev = m_sc[h]                          # (tq, 1) f32
            m_new = jnp.maximum(m_prev, jnp.max(s, axis=-1, keepdims=True))
            alpha = jnp.exp(m_prev - m_new)           # f32 softmax numerics
            p = jnp.exp(s - m_new)
            l_sc[h] = alpha * l_sc[h] + jnp.sum(p, axis=-1, keepdims=True)
            acc_sc[h] = alpha * acc_sc[h] + jnp.dot(
                p.astype(vp.dtype), vh, preferred_element_type=jnp.float32)
            m_sc[h] = m_new

        @pl.when(kv == pl.num_programs(2) - 1)
        def _finalize():
            tq, E = o_ref.shape[1], o_ref.shape[2]
            # Output projection folded into the per-head loop (no concat); the
            # wo row-slices start at h*D (multiple of 8) -> sublane-aligned.
            y = jnp.zeros((tq, E), jnp.float32)
            for h in range(H):
                lo = h * D
                head = (acc_sc[h] / l_sc[h]).astype(wo_ref.dtype)  # exact div
                y = y + jnp.dot(head, wo_ref[lo:lo + D, :],
                                preferred_element_type=jnp.float32)
            o_ref[0] = (y + bo_ref[...]).astype(o_ref.dtype)

    return kernel


def _pick_tile(n, candidates):
    """Largest candidate tile dividing n; full extent for small inputs."""
    for t in candidates:
        if n % t == 0:
            return t
    return n


def _vmem_limit_bytes(tq, tk, E, H, D, mm_bytes):
    """Explicit scoped-VMEM budget from the actual tile bytes (+ headroom)."""
    f32, lane = 4, 128
    pad = lambda x: max(x, lane)                      # lane padding, last dim
    tiles = (
        2 * tq * pad(E) * mm_bytes                    # q tile, double-buffered
        + 2 * 2 * tk * pad(E) * mm_bytes              # K + V tiles, 2 bufs each
        + 2 * tq * pad(E) * f32                       # output tile, 2 bufs
        + 2 * 2 * E * pad(E) * mm_bytes               # wq_bd + wo_t blocks
        + 2 * 8 * pad(E) * f32                        # bias
        + tq * pad(E) * mm_bytes                      # qp scratch
        + 2 * H * tq * lane * f32                     # m + l scratch (padded)
        + H * tq * pad(D) * f32                       # acc scratch (padded)
        + 4 * tq * pad(tk) * f32                      # logits/p working set
    )
    # 2x headroom, floor 32 MiB, clamp to 64 MiB so the setting is also legal
    # on v7x (64 MiB physical VMEM); v5e/v6e have 128 MiB.
    return int(min(64 * 1024 * 1024, max(32 * 1024 * 1024, 2 * tiles)))


# ----------------------------------------------------------------------------
# Wrapper: one-time weight prep + K/V projection in plain XLA, everything hot
# in a single fused pallas_call.
# ----------------------------------------------------------------------------
def multi_head_attention(key, query, value, params, n_heads,
                         matmul_dtype=jnp.bfloat16, q_tile=None, kv_tile=None):
    """key/query/value: (B, S, E) float32. Returns (B, Sq, E) float32."""
    B, S, E = key.shape
    Sq = query.shape[1]
    H = n_heads
    D = E // H
    assert H * D == E and D % 8 == 0, "head_dim must be a multiple of 8"

    f32 = jnp.float32
    inv_sqrt_d = 1.0 / math.sqrt(D)

    # Block-diagonal, pre-transposed Q weight (kron(I_H, wq^T)) with the
    # 1/sqrt(D) softmax scale folded in; wo pre-transposed; bias kept f32.
    eye_h = jnp.eye(H, dtype=f32)
    wq_bd = (jnp.kron(eye_h, params["wq"].T) * inv_sqrt_d).astype(matmul_dtype)
    wo_t = params["wo"].T.astype(matmul_dtype)
    bo = params["bo"].astype(f32)

    # K/V per-head projections hoisted out of the kernel: computed once (f32),
    # then cast to the matmul dtype for the kernel's K/V tiles.
    kp = (key.reshape(B, S, H, D) @ params["wk"].T).reshape(B, S, E)
    vp = (value.reshape(B, S, H, D) @ params["wv"].T).reshape(B, S, E)
    kp = kp.astype(matmul_dtype)
    vp = vp.astype(matmul_dtype)
    q = query.astype(matmul_dtype)

    # q-tile capped at 256 (v7x VMEM budget); kv tile up to 512.
    tq = q_tile if q_tile is not None else _pick_tile(Sq, (256, 128))
    tk = kv_tile if kv_tile is not None else _pick_tile(S, (512, 256, 128))
    assert Sq % tq == 0 and S % tk == 0
    grid = (B, Sq // tq, S // tk)

    # TODO(synk): for large E, add pipeline_mode=pl.Buffered(1) on the
    # constant-index weight BlockSpecs to halve weight VMEM (blocks never
    # change); negligible at the demo's E=32.
    return pl.pallas_call(
        _make_mha_flash_kernel(H, D),
        out_shape=jax.ShapeDtypeStruct((B, Sq, E), f32),
        grid_spec=pltpu.PrefetchScalarGridSpec(
            num_scalar_prefetch=0,
            grid=grid,
            in_specs=[
                pl.BlockSpec((1, tq, E), lambda b, qi, kv: (b, qi, 0)),  # q
                pl.BlockSpec((1, tk, E), lambda b, qi, kv: (b, kv, 0)),  # K proj
                pl.BlockSpec((1, tk, E), lambda b, qi, kv: (b, kv, 0)),  # V proj
                pl.BlockSpec((E, E), lambda b, qi, kv: (0, 0)),          # wq_bd
                pl.BlockSpec((E, E), lambda b, qi, kv: (0, 0)),          # wo_t
                pl.BlockSpec((1, E), lambda b, qi, kv: (0, 0)),          # bias
            ],
            out_specs=pl.BlockSpec((1, tq, E), lambda b, qi, kv: (b, qi, 0)),
            scratch_shapes=[
                pltpu.VMEM((tq, E), matmul_dtype),   # cached projected Q tile
                pltpu.VMEM((H, tq, 1), f32),         # per-head running max
                pltpu.VMEM((H, tq, 1), f32),         # per-head running denom
                pltpu.VMEM((H, tq, D), f32),         # per-head accumulator
            ],
        ),
        compiler_params=pltpu.CompilerParams(
            # b and qi parallel (megacore / 2-TC sharding on v7x; B=2 gives
            # both cores work), kv is the online-softmax reduction axis.
            dimension_semantics=("parallel", "parallel", "arbitrary"),
            vmem_limit_bytes=_vmem_limit_bytes(
                tq, tk, E, H, D, jnp.dtype(matmul_dtype).itemsize),
        ),
    )(q, kp, vp, wq_bd, wo_t, bo)


# ----------------------------------------------------------------------------
# Pure-JAX reference (mirrors the PyTorch forward exactly) for validation.
# ----------------------------------------------------------------------------
def reference(key, query, value, params, n_heads):
    B, S, E = key.shape
    Sq = query.shape[1]
    D = E // n_heads
    k = key.reshape(B, S, n_heads, D) @ params["wk"].T
    q = query.reshape(B, Sq, n_heads, D) @ params["wq"].T
    v = value.reshape(B, S, n_heads, D) @ params["wv"].T
    q = q.transpose(0, 2, 1, 3)
    k = k.transpose(0, 2, 1, 3)
    v = v.transpose(0, 2, 1, 3)
    product = q @ k.transpose(0, 1, 3, 2) / math.sqrt(D)
    scores = jax.nn.softmax(product, axis=-1)
    scores = scores @ v
    concat = scores.transpose(0, 2, 1, 3).reshape(B, Sq, n_heads * D)
    return concat @ params["wo"].T + params["bo"][0]


if __name__ == "__main__":
    # Small shapes consistent with the module: embed_dim=32, n_heads=4 -> D=8.
    B, S, E, H = 2, 8, 32, 4
    D = E // H

    root = jax.random.PRNGKey(0)
    kk, kq, kv_, k1, k2, k3, k4, k5 = jax.random.split(root, 8)

    key_in = jax.random.normal(kk, (B, S, E), dtype=jnp.float32)
    query_in = jax.random.normal(kq, (B, S, E), dtype=jnp.float32)
    value_in = jax.random.normal(kv_, (B, S, E), dtype=jnp.float32)

    # Deterministic parameter init (torch Linear shapes: weight = (out, in)).
    params = {
        "wq": jax.random.normal(k1, (D, D), jnp.float32) / math.sqrt(D),
        "wk": jax.random.normal(k2, (D, D), jnp.float32) / math.sqrt(D),
        "wv": jax.random.normal(k3, (D, D), jnp.float32) / math.sqrt(D),
        "wo": jax.random.normal(k4, (E, E), jnp.float32) / math.sqrt(E),
        "bo": jax.random.normal(k5, (1, E), jnp.float32) * 0.01,
    }

    ref = reference(key_in, query_in, value_in, params, H)

    # 1) f32 matmul path: tight parity with the PyTorch forward (exact
    #    reciprocal; only op-reordering differences from the flash recurrence).
    out_f32 = jax.block_until_ready(
        multi_head_attention(key_in, query_in, value_in, params, H,
                             matmul_dtype=jnp.float32))
    assert out_f32.shape == (B, S, E)
    assert jnp.allclose(out_f32, ref, atol=1e-4, rtol=1e-4), "f32 path mismatch"

    # 2) bf16 matmul path (production default): MXU-native dtype, f32 softmax;
    #    tolerance reflects bf16 input/weight rounding only.
    out_bf16 = jax.block_until_ready(
        multi_head_attention(key_in, query_in, value_in, params, H))
    assert out_bf16.shape == (B, S, E)
    assert jnp.allclose(out_bf16, ref, atol=1e-1, rtol=1e-1), "bf16 path mismatch"

    # 3) Multi q-tile / multi kv-tile flash path: exercises the online-softmax
    #    init/finalize across the kv grid axis and the cached Q projection.
    B2, S2, Sq2 = 2, 32, 16
    kk2, kq2, kv2 = jax.random.split(jax.random.PRNGKey(1), 3)
    key2 = jax.random.normal(kk2, (B2, S2, E), jnp.float32)
    query2 = jax.random.normal(kq2, (B2, Sq2, E), jnp.float32)
    value2 = jax.random.normal(kv2, (B2, S2, E), jnp.float32)
    ref2 = reference(key2, query2, value2, params, H)
    out2 = jax.block_until_ready(
        multi_head_attention(key2, query2, value2, params, H,
                             matmul_dtype=jnp.float32, q_tile=8, kv_tile=8))
    assert out2.shape == (B2, Sq2, E)
    assert jnp.allclose(out2, ref2, atol=1e-4, rtol=1e-4), "flash tiling mismatch"

    print("KERNEL_OK")
</pallas_src>

<mosaic_0001>
module attributes {stable_mosaic.version = 11 : i64} {
  func.func @kernel(%arg0: i32, %arg1: i32, %arg2: i32, %arg3: memref<1x8x32xf32, #tpu.memory_space<vmem>>, %arg4: memref<1x8x32xf32, #tpu.memory_space<vmem>>, %arg5: memref<1x8x32xf32, #tpu.memory_space<vmem>>, %arg6: memref<32x32xf32, #tpu.memory_space<vmem>>, %arg7: memref<32x32xf32, #tpu.memory_space<vmem>>, %arg8: memref<1x32xf32, #tpu.memory_space<vmem>>, %arg9: memref<1x8x32xf32, #tpu.memory_space<vmem>>, %arg10: memref<8x32xf32, #tpu.memory_space<vmem>>, %arg11: memref<4x8x1xf32, #tpu.memory_space<vmem>>, %arg12: memref<4x8x1xf32, #tpu.memory_space<vmem>>, %arg13: memref<4x8x8xf32, #tpu.memory_space<vmem>>) attributes {dimension_semantics = [#tpu.dimension_semantics<parallel>, #tpu.dimension_semantics<parallel>, #tpu.dimension_semantics<arbitrary>], iteration_bounds = array<i64: 2, 1, 1>, scalar_prefetch = 0 : i64, scratch_operands = 4 : i64, tpu.core_type = #tpu.core_type<tc>, window_params = [{transform_indices = @transform_0, window_bounds = array<i64: 1, 8, 32>}, {transform_indices = @transform_1, window_bounds = array<i64: 1, 8, 32>}, {transform_indices = @transform_2, window_bounds = array<i64: 1, 8, 32>}, {pipeline_mode = #tpu.pipeline_mode<synchronous>, transform_indices = @transform_3, window_bounds = array<i64: 32, 32>}, {pipeline_mode = #tpu.pipeline_mode<synchronous>, transform_indices = @transform_4, window_bounds = array<i64: 32, 32>}, {pipeline_mode = #tpu.pipeline_mode<synchronous>, transform_indices = @transform_5, window_bounds = array<i64: 1, 32>}, {transform_indices = @transform_6, window_bounds = array<i64: 1, 8, 32>}]} {
    %c0_i32 = arith.constant 0 : i32
    %0 = arith.cmpi eq, %arg2, %c0_i32 : i32
    %1 = arith.extui %0 : i1 to i32
    %c0_i32_0 = arith.constant 0 : i32
    %2 = arith.cmpi ne, %1, %c0_i32_0 : i32
    scf.if %2 {
      %c0_94 = arith.constant 0 : index
      %c0_95 = arith.constant 0 : index
      %c0_96 = arith.constant 0 : index
      %151 = vector.load %arg3[%c0_94, %c0_95, %c0_96] : memref<1x8x32xf32, #tpu.memory_space<vmem>>, vector<1x8x32xf32>
      %152 = vector.shape_cast %151 : vector<1x8x32xf32> to vector<8x32xf32>
      %c0_97 = arith.constant 0 : index
      %c0_98 = arith.constant 0 : index
      %153 = vector.load %arg6[%c0_97, %c0_98] : memref<32x32xf32, #tpu.memory_space<vmem>>, vector<32x32xf32>
      %cst_99 = arith.constant dense<0.000000e+00> : vector<8x32xf32>
      %154 = tpu.matmul %152, %153, %cst_99 {dimension_numbers = #tpu.dot_dimension_numbers<[1], [0], [0], [1], [0, 0, 1, 1], [], []>} : vector<8x32xf32>, vector<32x32xf32>, vector<8x32xf32> -> vector<8x32xf32>
      %c0_100 = arith.constant 0 : index
      %c0_101 = arith.constant 0 : index
      %155 = vector.load %arg10[%c0_100, %c0_101] : memref<8x32xf32, #tpu.memory_space<vmem>>, vector<8x32xf32>
      tpu.vector_store %arg10[%c0_100, %c0_101], %154 {strides = array<i32>} : memref<8x32xf32, #tpu.memory_space<vmem>>, vector<8x32xf32>,
      %cst_102 = arith.constant 0xFF800000 : f32
      %156 = vector.broadcast %cst_102 : f32 to vector<4x8x1xf32>
      %c0_103 = arith.constant 0 : index
      %c0_104 = arith.constant 0 : index
      %c0_105 = arith.constant 0 : index
      %157 = vector.load %arg11[%c0_103, %c0_104, %c0_105] : memref<4x8x1xf32, #tpu.memory_space<vmem>>, vector<4x8x1xf32>
      tpu.vector_store %arg11[%c0_103, %c0_104, %c0_105], %156 {strides = array<i32>} : memref<4x8x1xf32, #tpu.memory_space<vmem>>, vector<4x8x1xf32>,
      %cst_106 = arith.constant 0.000000e+00 : f32
      %158 = vector.broadcast %cst_106 : f32 to vector<4x8x1xf32>
      %c0_107 = arith.constant 0 : index
      %c0_108 = arith.constant 0 : index
      %c0_109 = arith.constant 0 : index
      %159 = vector.load %arg12[%c0_107, %c0_108, %c0_109] : memref<4x8x1xf32, #tpu.memory_space<vmem>>, vector<4x8x1xf32>
      tpu.vector_store %arg12[%c0_107, %c0_108, %c0_109], %158 {strides = array<i32>} : memref<4x8x1xf32, #tpu.memory_space<vmem>>, vector<4x8x1xf32>,
      %cst_110 = arith.constant 0.000000e+00 : f32
      %160 = vector.broadcast %cst_110 : f32 to vector<4x8x8xf32>
      %c0_111 = arith.constant 0 : index
      %c0_112 = arith.constant 0 : index
      %c0_113 = arith.constant 0 : index
      %161 = vector.load %arg13[%c0_111, %c0_112, %c0_113] : memref<4x8x8xf32, #tpu.memory_space<vmem>>, vector<4x8x8xf32>
      tpu.vector_store %arg13[%c0_111, %c0_112, %c0_113], %160 {strides = array<i32>} : memref<4x8x8xf32, #tpu.memory_space<vmem>>, vector<4x8x8xf32>,
    } else {
    }
    %c0 = arith.constant 0 : index
    %c0_1 = arith.constant 0 : index
    %c0_2 = arith.constant 0 : index
    %3 = vector.load %arg4[%c0, %c0_1, %c0_2] : memref<1x8x32xf32, #tpu.memory_space<vmem>>, vector<1x8x32xf32>
    %4 = vector.shape_cast %3 : vector<1x8x32xf32> to vector<8x32xf32>
    %c0_3 = arith.constant 0 : index
    %c0_4 = arith.constant 0 : index
    %c0_5 = arith.constant 0 : index
    %5 = vector.load %arg5[%c0_3, %c0_4, %c0_5] : memref<1x8x32xf32, #tpu.memory_space<vmem>>, vector<1x8x32xf32>
    %6 = vector.shape_cast %5 : vector<1x8x32xf32> to vector<8x32xf32>
    %c0_6 = arith.constant 0 : index
    %c0_7 = arith.constant 0 : index
    %7 = vector.load %arg10[%c0_6, %c0_7] : memref<8x32xf32, #tpu.memory_space<vmem>>, vector<8x32xf32>
    %8 = vector.extract_strided_slice %7 {offsets = [0, 0], sizes = [8, 8], strides = [1, 1]} : vector<8x32xf32> to vector<8x8xf32>
    %9 = vector.extract_strided_slice %4 {offsets = [0, 0], sizes = [8, 8], strides = [1, 1]} : vector<8x32xf32> to vector<8x8xf32>
    %10 = vector.extract_strided_slice %6 {offsets = [0, 0], sizes = [8, 8], strides = [1, 1]} : vector<8x32xf32> to vector<8x8xf32>
    %cst = arith.constant dense<0.000000e+00> : vector<8x8xf32>
    %11 = tpu.matmul %8, %9, %cst {dimension_numbers = #tpu.dot_dimension_numbers<[1], [1], [0], [0], [0, 0, 1, 0], [], []>} : vector<8x8xf32>, vector<8x8xf32>, vector<8x8xf32> -> vector<8x8xf32>
    %c0_8 = arith.constant 0 : index
    %c0_9 = arith.constant 0 : index
    %c0_10 = arith.constant 0 : index
    %12 = vector.load %arg11[%c0_8, %c0_9, %c0_10] : memref<4x8x1xf32, #tpu.memory_space<vmem>>, vector<1x8x1xf32>
    %13 = vector.shape_cast %12 : vector<1x8x1xf32> to vector<8x1xf32>
    %cst_11 = arith.constant dense<0xFF800000> : vector<8xf32>
    %14 = vector.multi_reduction <maximumf>, %11, %cst_11 [1] : vector<8x8xf32> to vector<8xf32>
    %15 = vector.shape_cast %14 : vector<8xf32> to vector<8x1xf32>
    %16 = arith.maximumf %13, %15 : vector<8x1xf32>
    %17 = arith.subf %13, %16 : vector<8x1xf32>
    %18 = math.exp %17 : vector<8x1xf32>
    %19 = vector.broadcast %16 : vector<8x1xf32> to vector<8x8xf32>
    %20 = arith.subf %11, %19 : vector<8x8xf32>
    %21 = math.exp %20 : vector<8x8xf32>
    %c0_12 = arith.constant 0 : index
    %c0_13 = arith.constant 0 : index
    %c0_14 = arith.constant 0 : index
    %22 = vector.load %arg12[%c0_12, %c0_13, %c0_14] : memref<4x8x1xf32, #tpu.memory_space<vmem>>, vector<1x8x1xf32>
    %23 = vector.shape_cast %22 : vector<1x8x1xf32> to vector<8x1xf32>
    %24 = arith.mulf %18, %23 : vector<8x1xf32>
    %cst_15 = arith.constant dense<0.000000e+00> : vector<8xf32>
    %25 = vector.multi_reduction <add>, %21, %cst_15 [1] : vector<8x8xf32> to vector<8xf32>
    %26 = vector.shape_cast %25 : vector<8xf32> to vector<8x1xf32>
    %27 = arith.addf %24, %26 : vector<8x1xf32>
    %c0_16 = arith.constant 0 : index
    %c0_17 = arith.constant 0 : index
    %c0_18 = arith.constant 0 : index
    %28 = vector.load %arg12[%c0_16, %c0_17, %c0_18] : memref<4x8x1xf32, #tpu.memory_space<vmem>>, vector<1x8x1xf32>
    %29 = vector.shape_cast %28 : vector<1x8x1xf32> to vector<8x1xf32>
    %30 = vector.shape_cast %27 : vector<8x1xf32> to vector<1x8x1xf32>
    tpu.vector_store %arg12[%c0_16, %c0_17, %c0_18], %30 {strides = array<i32>} : memref<4x8x1xf32, #tpu.memory_space<vmem>>, vector<1x8x1xf32>,
    %c0_19 = arith.constant 0 : index
    %c0_20 = arith.constant 0 : index
    %c0_21 = arith.constant 0 : index
    %31 = vector.load %arg13[%c0_19, %c0_20, %c0_21] : memref<4x8x8xf32, #tpu.memory_space<vmem>>, vector<1x8x8xf32>
    %32 = vector.shape_cast %31 : vector<1x8x8xf32> to vector<8x8xf32>
    %33 = vector.broadcast %18 : vector<8x1xf32> to vector<8x8xf32>
    %34 = arith.mulf %33, %32 : vector<8x8xf32>
    %cst_22 = arith.constant dense<0.000000e+00> : vector<8x8xf32>
    %35 = tpu.matmul %21, %10, %cst_22 {dimension_numbers = #tpu.dot_dimension_numbers<[1], [0], [0], [1], [0, 0, 1, 1], [], []>} : vector<8x8xf32>, vector<8x8xf32>, vector<8x8xf32> -> vector<8x8xf32>
    %36 = arith.addf %34, %35 : vector<8x8xf32>
    %c0_23 = arith.constant 0 : index
    %c0_24 = arith.constant 0 : index
    %c0_25 = arith.constant 0 : index
    %37 = vector.load %arg13[%c0_23, %c0_24, %c0_25] : memref<4x8x8xf32, #tpu.memory_space<vmem>>, vector<1x8x8xf32>
    %38 = vector.shape_cast %37 : vector<1x8x8xf32> to vector<8x8xf32>
    %39 = vector.shape_cast %36 : vector<8x8xf32> to vector<1x8x8xf32>
    tpu.vector_store %arg13[%c0_23, %c0_24, %c0_25], %39 {strides = array<i32>} : memref<4x8x8xf32, #tpu.memory_space<vmem>>, vector<1x8x8xf32>,
    %c0_26 = arith.constant 0 : index
    %c0_27 = arith.constant 0 : index
    %c0_28 = arith.constant 0 : index
    %40 = vector.load %arg11[%c0_26, %c0_27, %c0_28] : memref<4x8x1xf32, #tpu.memory_space<vmem>>, vector<1x8x1xf32>
    %41 = vector.shape_cast %40 : vector<1x8x1xf32> to vector<8x1xf32>
    %42 = vector.shape_cast %16 : vector<8x1xf32> to vector<1x8x1xf32>
    tpu.vector_store %arg11[%c0_26, %c0_27, %c0_28], %42 {strides = array<i32>} : memref<4x8x1xf32, #tpu.memory_space<vmem>>, vector<1x8x1xf32>,
    %43 = vector.extract_strided_slice %7 {offsets = [0, 8], sizes = [8, 8], strides = [1, 1]} : vector<8x32xf32> to vector<8x8xf32>
    %44 = vector.extract_strided_slice %4 {offsets = [0, 8], sizes = [8, 8], strides = [1, 1]} : vector<8x32xf32> to vector<8x8xf32>
    %45 = vector.extract_strided_slice %6 {offsets = [0, 8], sizes = [8, 8], strides = [1, 1]} : vector<8x32xf32> to vector<8x8xf32>
    %cst_29 = arith.constant dense<0.000000e+00> : vector<8x8xf32>
    %46 = tpu.matmul %43, %44, %cst_29 {dimension_numbers = #tpu.dot_dimension_numbers<[1], [1], [0], [0], [0, 0, 1, 0], [], []>} : vector<8x8xf32>, vector<8x8xf32>, vector<8x8xf32> -> vector<8x8xf32>
    %c1 = arith.constant 1 : index
    %c0_30 = arith.constant 0 : index
    %c0_31 = arith.constant 0 : index
    %47 = vector.load %arg11[%c1, %c0_30, %c0_31] : memref<4x8x1xf32, #tpu.memory_space<vmem>>, vector<1x8x1xf32>
    %48 = vector.shape_cast %47 : vector<1x8x1xf32> to vector<8x1xf32>
    %cst_32 = arith.constant dense<0xFF800000> : vector<8xf32>
    %49 = vector.multi_reduction <maximumf>, %46, %cst_32 [1] : vector<8x8xf32> to vector<8xf32>
    %50 = vector.shape_cast %49 : vector<8xf32> to vector<8x1xf32>
    %51 = arith.maximumf %48, %50 : vector<8x1xf32>
    %52 = arith.subf %48, %51 : vector<8x1xf32>
    %53 = math.exp %52 : vector<8x1xf32>
    %54 = vector.broadcast %51 : vector<8x1xf32> to vector<8x8xf32>
    %55 = arith.subf %46, %54 : vector<8x8xf32>
    %56 = math.exp %55 : vector<8x8xf32>
    %c1_33 = arith.constant 1 : index
    %c0_34 = arith.constant 0 : index
    %c0_35 = arith.constant 0 : index
    %57 = vector.load %arg12[%c1_33, %c0_34, %c0_35] : memref<4x8x1xf32, #tpu.memory_space<vmem>>, vector<1x8x1xf32>
    %58 = vector.shape_cast %57 : vector<1x8x1xf32> to vector<8x1xf32>
    %59 = arith.mulf %53, %58 : vector<8x1xf32>
    %cst_36 = arith.constant dense<0.000000e+00> : vector<8xf32>
    %60 = vector.multi_reduction <add>, %56, %cst_36 [1] : vector<8x8xf32> to vector<8xf32>
    %61 = vector.shape_cast %60 : vector<8xf32> to vector<8x1xf32>
    %62 = arith.addf %59, %61 : vector<8x1xf32>
    %c1_37 = arith.constant 1 : index
    %c0_38 = arith.constant 0 : index
    %c0_39 = arith.constant 0 : index
    %63 = vector.load %arg12[%c1_37, %c0_38, %c0_39] : memref<4x8x1xf32, #tpu.memory_space<vmem>>, vector<1x8x1xf32>
    %64 = vector.shape_cast %63 : vector<1x8x1xf32> to vector<8x1xf32>
    %65 = vector.shape_cast %62 : vector<8x1xf32> to vector<1x8x1xf32>
    tpu.vector_store %arg12[%c1_37, %c0_38, %c0_39], %65 {strides = array<i32>} : memref<4x8x1xf32, #tpu.memory_space<vmem>>, vector<1x8x1xf32>,
    %c1_40 = arith.constant 1 : index
    %c0_41 = arith.constant 0 : index
    %c0_42 = arith.constant 0 : index
    %66 = vector.load %arg13[%c1_40, %c0_41, %c0_42] : memref<4x8x8xf32, #tpu.memory_space<vmem>>, vector<1x8x8xf32>
    %67 = vector.shape_cast %66 : vector<1x8x8xf32> to vector<8x8xf32>
    %68 = vector.broadcast %53 : vector<8x1xf32> to vector<8x8xf32>
    %69 = arith.mulf %68, %67 : vector<8x8xf32>
    %cst_43 = arith.constant dense<0.000000e+00> : vector<8x8xf32>
    %70 = tpu.matmul %56, %45, %cst_43 {dimension_numbers = #tpu.dot_dimension_numbers<[1], [0], [0], [1], [0, 0, 1, 1], [], []>} : vector<8x8xf32>, vector<8x8xf32>, vector<8x8xf32> -> vector<8x8xf32>
    %71 = arith.addf %69, %70 : vector<8x8xf32>
    %c1_44 = arith.constant 1 : index
    %c0_45 = arith.constant 0 : index
    %c0_46 = arith.constant 0 : index
    %72 = vector.load %arg13[%c1_44, %c0_45, %c0_46] : memref<4x8x8xf32, #tpu.memory_space<vmem>>, vector<1x8x8xf32>
    %73 = vector.shape_cast %72 : vector<1x8x8xf32> to vector<8x8xf32>
    %74 = vector.shape_cast %71 : vector<8x8xf32> to vector<1x8x8xf32>
    tpu.vector_store %arg13[%c1_44, %c0_45, %c0_46], %74 {strides = array<i32>} : memref<4x8x8xf32, #tpu.memory_space<vmem>>, vector<1x8x8xf32>,
    %c1_47 = arith.constant 1 : index
    %c0_48 = arith.constant 0 : index
    %c0_49 = arith.constant 0 : index
    %75 = vector.load %arg11[%c1_47, %c0_48, %c0_49] : memref<4x8x1xf32, #tpu.memory_space<vmem>>, vector<1x8x1xf32>
    %76 = vector.shape_cast %75 : vector<1x8x1xf32> to vector<8x1xf32>
    %77 = vector.shape_cast %51 : vector<8x1xf32> to vector<1x8x1xf32>
    tpu.vector_store %arg11[%c1_47, %c0_48, %c0_49], %77 {strides = array<i32>} : memref<4x8x1xf32, #tpu.memory_space<vmem>>, vector<1x8x1xf32>,
    %78 = vector.extract_strided_slice %7 {offsets = [0, 16], sizes = [8, 8], strides = [1, 1]} : vector<8x32xf32> to vector<8x8xf32>
    %79 = vector.extract_strided_slice %4 {offsets = [0, 16], sizes = [8, 8], strides = [1, 1]} : vector<8x32xf32> to vector<8x8xf32>
    %80 = vector.extract_strided_slice %6 {offsets = [0, 16], sizes = [8, 8], strides = [1, 1]} : vector<8x32xf32> to vector<8x8xf32>
    %cst_50 = arith.constant dense<0.000000e+00> : vector<8x8xf32>
    %81 = tpu.matmul %78, %79, %cst_50 {dimension_numbers = #tpu.dot_dimension_numbers<[1], [1], [0], [0], [0, 0, 1, 0], [], []>} : vector<8x8xf32>, vector<8x8xf32>, vector<8x8xf32> -> vector<8x8xf32>
    %c2 = arith.constant 2 : index
    %c0_51 = arith.constant 0 : index
    %c0_52 = arith.constant 0 : index
    %82 = vector.load %arg11[%c2, %c0_51, %c0_52] : memref<4x8x1xf32, #tpu.memory_space<vmem>>, vector<1x8x1xf32>
    %83 = vector.shape_cast %82 : vector<1x8x1xf32> to vector<8x1xf32>
    %cst_53 = arith.constant dense<0xFF800000> : vector<8xf32>
    %84 = vector.multi_reduction <maximumf>, %81, %cst_53 [1] : vector<8x8xf32> to vector<8xf32>
    %85 = vector.shape_cast %84 : vector<8xf32> to vector<8x1xf32>
    %86 = arith.maximumf %83, %85 : vector<8x1xf32>
    %87 = arith.subf %83, %86 : vector<8x1xf32>
    %88 = math.exp %87 : vector<8x1xf32>
    %89 = vector.broadcast %86 : vector<8x1xf32> to vector<8x8xf32>
    %90 = arith.subf %81, %89 : vector<8x8xf32>
    %91 = math.exp %90 : vector<8x8xf32>
    %c2_54 = arith.constant 2 : index
    %c0_55 = arith.constant 0 : index
    %c0_56 = arith.constant 0 : index
    %92 = vector.load %arg12[%c2_54, %c0_55, %c0_56] : memref<4x8x1xf32, #tpu.memory_space<vmem>>, vector<1x8x1xf32>
    %93 = vector.shape_cast %92 : vector<1x8x1xf32> to vector<8x1xf32>
    %94 = arith.mulf %88, %93 : vector<8x1xf32>
    %cst_57 = arith.constant dense<0.000000e+00> : vector<8xf32>
    %95 = vector.multi_reduction <add>, %91, %cst_57 [1] : vector<8x8xf32> to vector<8xf32>
    %96 = vector.shape_cast %95 : vector<8xf32> to vector<8x1xf32>
    %97 = arith.addf %94, %96 : vector<8x1xf32>
    %c2_58 = arith.constant 2 : index
    %c0_59 = arith.constant 0 : index
    %c0_60 = arith.constant 0 : index
    %98 = vector.load %arg12[%c2_58, %c0_59, %c0_60] : memref<4x8x1xf32, #tpu.memory_space<vmem>>, vector<1x8x1xf32>
    %99 = vector.shape_cast %98 : vector<1x8x1xf32> to vector<8x1xf32>
    %100 = vector.shape_cast %97 : vector<8x1xf32> to vector<1x8x1xf32>
    tpu.vector_store %arg12[%c2_58, %c0_59, %c0_60], %100 {strides = array<i32>} : memref<4x8x1xf32, #tpu.memory_space<vmem>>, vector<1x8x1xf32>,
    %c2_61 = arith.constant 2 : index
    %c0_62 = arith.constant 0 : index
    %c0_63 = arith.constant 0 : index
    %101 = vector.load %arg13[%c2_61, %c0_62, %c0_63] : memref<4x8x8xf32, #tpu.memory_space<vmem>>, vector<1x8x8xf32>
    %102 = vector.shape_cast %101 : vector<1x8x8xf32> to vector<8x8xf32>
    %103 = vector.broadcast %88 : vector<8x1xf32> to vector<8x8xf32>
    %104 = arith.mulf %103, %102 : vector<8x8xf32>
    %cst_64 = arith.constant dense<0.000000e+00> : vector<8x8xf32>
    %105 = tpu.matmul %91, %80, %cst_64 {dimension_numbers = #tpu.dot_dimension_numbers<[1], [0], [0], [1], [0, 0, 1, 1], [], []>} : vector<8x8xf32>, vector<8x8xf32>, vector<8x8xf32> -> vector<8x8xf32>
    %106 = arith.addf %104, %105 : vector<8x8xf32>
    %c2_65 = arith.constant 2 : index
    %c0_66 = arith.constant 0 : index
    %c0_67 = arith.constant 0 : index
    %107 = vector.load %arg13[%c2_65, %c0_66, %c0_67] : memref<4x8x8xf32, #tpu.memory_space<vmem>>, vector<1x8x8xf32>
    %108 = vector.shape_cast %107 : vector<1x8x8xf32> to vector<8x8xf32>
    %109 = vector.shape_cast %106 : vector<8x8xf32> to vector<1x8x8xf32>
    tpu.vector_store %arg13[%c2_65, %c0_66, %c0_67], %109 {strides = array<i32>} : memref<4x8x8xf32, #tpu.memory_space<vmem>>, vector<1x8x8xf32>,
    %c2_68 = arith.constant 2 : index
    %c0_69 = arith.constant 0 : index
    %c0_70 = arith.constant 0 : index
    %110 = vector.load %arg11[%c2_68, %c0_69, %c0_70] : memref<4x8x1xf32, #tpu.memory_space<vmem>>, vector<1x8x1xf32>
    %111 = vector.shape_cast %110 : vector<1x8x1xf32> to vector<8x1xf32>
    %112 = vector.shape_cast %86 : vector<8x1xf32> to vector<1x8x1xf32>
    tpu.vector_store %arg11[%c2_68, %c0_69, %c0_70], %112 {strides = array<i32>} : memref<4x8x1xf32, #tpu.memory_space<vmem>>, vector<1x8x1xf32>,
    %113 = vector.extract_strided_slice %7 {offsets = [0, 24], sizes = [8, 8], strides = [1, 1]} : vector<8x32xf32> to vector<8x8xf32>
    %114 = vector.extract_strided_slice %4 {offsets = [0, 24], sizes = [8, 8], strides = [1, 1]} : vector<8x32xf32> to vector<8x8xf32>
    %115 = vector.extract_strided_slice %6 {offsets = [0, 24], sizes = [8, 8], strides = [1, 1]} : vector<8x32xf32> to vector<8x8xf32>
    %cst_71 = arith.constant dense<0.000000e+00> : vector<8x8xf32>
    %116 = tpu.matmul %113, %114, %cst_71 {dimension_numbers = #tpu.dot_dimension_numbers<[1], [1], [0], [0], [0, 0, 1, 0], [], []>} : vector<8x8xf32>, vector<8x8xf32>, vector<8x8xf32> -> vector<8x8xf32>
    %c3 = arith.constant 3 : index
    %c0_72 = arith.constant 0 : index
    %c0_73 = arith.constant 0 : index
    %117 = vector.load %arg11[%c3, %c0_72, %c0_73] : memref<4x8x1xf32, #tpu.memory_space<vmem>>, vector<1x8x1xf32>
    %118 = vector.shape_cast %117 : vector<1x8x1xf32> to vector<8x1xf32>
    %cst_74 = arith.constant dense<0xFF800000> : vector<8xf32>
    %119 = vector.multi_reduction <maximumf>, %116, %cst_74 [1] : vector<8x8xf32> to vector<8xf32>
    %120 = vector.shape_cast %119 : vector<8xf32> to vector<8x1xf32>
    %121 = arith.maximumf %118, %120 : vector<8x1xf32>
    %122 = arith.subf %118, %121 : vector<8x1xf32>
    %123 = math.exp %122 : vector<8x1xf32>
    %124 = vector.broadcast %121 : vector<8x1xf32> to vector<8x8xf32>
    %125 = arith.subf %116, %124 : vector<8x8xf32>
    %126 = math.exp %125 : vector<8x8xf32>
    %c3_75 = arith.constant 3 : index
    %c0_76 = arith.constant 0 : index
    %c0_77 = arith.constant 0 : index
    %127 = vector.load %arg12[%c3_75, %c0_76, %c0_77] : memref<4x8x1xf32, #tpu.memory_space<vmem>>, vector<1x8x1xf32>
    %128 = vector.shape_cast %127 : vector<1x8x1xf32> to vector<8x1xf32>
    %129 = arith.mulf %123, %128 : vector<8x1xf32>
    %cst_78 = arith.constant dense<0.000000e+00> : vector<8xf32>
    %130 = vector.multi_reduction <add>, %126, %cst_78 [1] : vector<8x8xf32> to vector<8xf32>
    %131 = vector.shape_cast %130 : vector<8xf32> to vector<8x1xf32>
    %132 = arith.addf %129, %131 : vector<8x1xf32>
    %c3_79 = arith.constant 3 : index
    %c0_80 = arith.constant 0 : index
    %c0_81 = arith.constant 0 : index
    %133 = vector.load %arg12[%c3_79, %c0_80, %c0_81] : memref<4x8x1xf32, #tpu.memory_space<vmem>>, vector<1x8x1xf32>
    %134 = vector.shape_cast %133 : vector<1x8x1xf32> to vector<8x1xf32>
    %135 = vector.shape_cast %132 : vector<8x1xf32> to vector<1x8x1xf32>
    tpu.vector_store %arg12[%c3_79, %c0_80, %c0_81], %135 {strides = array<i32>} : memref<4x8x1xf32, #tpu.memory_space<vmem>>, vector<1x8x1xf32>,
    %c3_82 = arith.constant 3 : index
    %c0_83 = arith.constant 0 : index
    %c0_84 = arith.constant 0 : index
    %136 = vector.load %arg13[%c3_82, %c0_83, %c0_84] : memref<4x8x8xf32, #tpu.memory_space<vmem>>, vector<1x8x8xf32>
    %137 = vector.shape_cast %136 : vector<1x8x8xf32> to vector<8x8xf32>
    %138 = vector.broadcast %123 : vector<8x1xf32> to vector<8x8xf32>
    %139 = arith.mulf %138, %137 : vector<8x8xf32>
    %cst_85 = arith.constant dense<0.000000e+00> : vector<8x8xf32>
    %140 = tpu.matmul %126, %115, %cst_85 {dimension_numbers = #tpu.dot_dimension_numbers<[1], [0], [0], [1], [0, 0, 1, 1], [], []>} : vector<8x8xf32>, vector<8x8xf32>, vector<8x8xf32> -> vector<8x8xf32>
    %141 = arith.addf %139, %140 : vector<8x8xf32>
    %c3_86 = arith.constant 3 : index
    %c0_87 = arith.constant 0 : index
    %c0_88 = arith.constant 0 : index
    %142 = vector.load %arg13[%c3_86, %c0_87, %c0_88] : memref<4x8x8xf32, #tpu.memory_space<vmem>>, vector<1x8x8xf32>
    %143 = vector.shape_cast %142 : vector<1x8x8xf32> to vector<8x8xf32>
    %144 = vector.shape_cast %141 : vector<8x8xf32> to vector<1x8x8xf32>
    tpu.vector_store %arg13[%c3_86, %c0_87, %c0_88], %144 {strides = array<i32>} : memref<4x8x8xf32, #tpu.memory_space<vmem>>, vector<1x8x8xf32>,
    %c3_89 = arith.constant 3 : index
    %c0_90 = arith.constant 0 : index
    %c0_91 = arith.constant 0 : index
    %145 = vector.load %arg11[%c3_89, %c0_90, %c0_91] : memref<4x8x1xf32, #tpu.memory_space<vmem>>, vector<1x8x1xf32>
    %146 = vector.shape_cast %145 : vector<1x8x1xf32> to vector<8x1xf32>
    %147 = vector.shape_cast %121 : vector<8x1xf32> to vector<1x8x1xf32>
    tpu.vector_store %arg11[%c3_89, %c0_90, %c0_91], %147 {strides = array<i32>} : memref<4x8x1xf32, #tpu.memory_space<vmem>>, vector<1x8x1xf32>,
    %c0_i32_92 = arith.constant 0 : i32
    %148 = arith.cmpi eq, %arg2, %c0_i32_92 : i32
    %149 = arith.extui %148 : i1 to i32
    %c0_i32_93 = arith.constant 0 : i32
    %150 = arith.cmpi ne, %149, %c0_i32_93 : i32
    scf.if %150 {
      %cst_94 = arith.constant 0.000000e+00 : f32
      %151 = vector.broadcast %cst_94 : f32 to vector<8x32xf32>
      %c0_95 = arith.constant 0 : index
      %c0_96 = arith.constant 0 : index
      %c0_97 = arith.constant 0 : index
      %152 = vector.load %arg13[%c0_95, %c0_96, %c0_97] : memref<4x8x8xf32, #tpu.memory_space<vmem>>, vector<1x8x8xf32>
      %153 = vector.shape_cast %152 : vector<1x8x8xf32> to vector<8x8xf32>
      %c0_98 = arith.constant 0 : index
      %c0_99 = arith.constant 0 : index
      %c0_100 = arith.constant 0 : index
      %154 = vector.load %arg12[%c0_98, %c0_99, %c0_100] : memref<4x8x1xf32, #tpu.memory_space<vmem>>, vector<1x8x1xf32>
      %155 = vector.shape_cast %154 : vector<1x8x1xf32> to vector<8x1xf32>
      %156 = vector.broadcast %155 : vector<8x1xf32> to vector<8x8xf32>
      %157 = arith.divf %153, %156 : vector<8x8xf32>
      %c0_101 = arith.constant 0 : index
      %c0_102 = arith.constant 0 : index
      %158 = vector.load %arg7[%c0_101, %c0_102] : memref<32x32xf32, #tpu.memory_space<vmem>>, vector<8x32xf32>
      %cst_103 = arith.constant dense<0.000000e+00> : vector<8x32xf32>
      %159 = tpu.matmul %157, %158, %cst_103 {dimension_numbers = #tpu.dot_dimension_numbers<[1], [0], [0], [1], [0, 0, 1, 1], [], []>} : vector<8x8xf32>, vector<8x32xf32>, vector<8x32xf32> -> vector<8x32xf32>
      %160 = arith.addf %151, %159 : vector<8x32xf32>
      %c1_104 = arith.constant 1 : index
      %c0_105 = arith.constant 0 : index
      %c0_106 = arith.constant 0 : index
      %161 = vector.load %arg13[%c1_104, %c0_105, %c0_106] : memref<4x8x8xf32, #tpu.memory_space<vmem>>, vector<1x8x8xf32>
      %162 = vector.shape_cast %161 : vector<1x8x8xf32> to vector<8x8xf32>
      %c1_107 = arith.constant 1 : index
      %c0_108 = arith.constant 0 : index
      %c0_109 = arith.constant 0 : index
      %163 = vector.load %arg12[%c1_107, %c0_108, %c0_109] : memref<4x8x1xf32, #tpu.memory_space<vmem>>, vector<1x8x1xf32>
      %164 = vector.shape_cast %163 : vector<1x8x1xf32> to vector<8x1xf32>
      %165 = vector.broadcast %164 : vector<8x1xf32> to vector<8x8xf32>
      %166 = arith.divf %162, %165 : vector<8x8xf32>
      %c8 = arith.constant 8 : index
      %c0_110 = arith.constant 0 : index
      %167 = vector.load %arg7[%c8, %c0_110] : memref<32x32xf32, #tpu.memory_space<vmem>>, vector<8x32xf32>
      %cst_111 = arith.constant dense<0.000000e+00> : vector<8x32xf32>
      %168 = tpu.matmul %166, %167, %cst_111 {dimension_numbers = #tpu.dot_dimension_numbers<[1], [0], [0], [1], [0, 0, 1, 1], [], []>} : vector<8x8xf32>, vector<8x32xf32>, vector<8x32xf32> -> vector<8x32xf32>
      %169 = arith.addf %160, %168 : vector<8x32xf32>
      %c2_112 = arith.constant 2 : index
      %c0_113 = arith.constant 0 : index
      %c0_114 = arith.constant 0 : index
      %170 = vector.load %arg13[%c2_112, %c0_113, %c0_114] : memref<4x8x8xf32, #tpu.memory_space<vmem>>, vector<1x8x8xf32>
      %171 = vector.shape_cast %170 : vector<1x8x8xf32> to vector<8x8xf32>
      %c2_115 = arith.constant 2 : index
      %c0_116 = arith.constant 0 : index
      %c0_117 = arith.constant 0 : index
      %172 = vector.load %arg12[%c2_115, %c0_116, %c0_117] : memref<4x8x1xf32, #tpu.memory_space<vmem>>, vector<1x8x1xf32>
      %173 = vector.shape_cast %172 : vector<1x8x1xf32> to vector<8x1xf32>
      %174 = vector.broadcast %173 : vector<8x1xf32> to vector<8x8xf32>
      %175 = arith.divf %171, %174 : vector<8x8xf32>
      %c16 = arith.constant 16 : index
      %c0_118 = arith.constant 0 : index
      %176 = vector.load %arg7[%c16, %c0_118] : memref<32x32xf32, #tpu.memory_space<vmem>>, vector<8x32xf32>
      %cst_119 = arith.constant dense<0.000000e+00> : vector<8x32xf32>
      %177 = tpu.matmul %175, %176, %cst_119 {dimension_numbers = #tpu.dot_dimension_numbers<[1], [0], [0], [1], [0, 0, 1, 1], [], []>} : vector<8x8xf32>, vector<8x32xf32>, vector<8x32xf32> -> vector<8x32xf32>
      %178 = arith.addf %169, %177 : vector<8x32xf32>
      %c3_120 = arith.constant 3 : index
      %c0_121 = arith.constant 0 : index
      %c0_122 = arith.constant 0 : index
      %179 = vector.load %arg13[%c3_120, %c0_121, %c0_122] : memref<4x8x8xf32, #tpu.memory_space<vmem>>, vector<1x8x8xf32>
      %180 = vector.shape_cast %179 : vector<1x8x8xf32> to vector<8x8xf32>
      %c3_123 = arith.constant 3 : index
      %c0_124 = arith.constant 0 : index
      %c0_125 = arith.constant 0 : index
      %181 = vector.load %arg12[%c3_123, %c0_124, %c0_125] : memref<4x8x1xf32, #tpu.memory_space<vmem>>, vector<1x8x1xf32>
      %182 = vector.shape_cast %181 : vector<1x8x1xf32> to vector<8x1xf32>
      %183 = vector.broadcast %182 : vector<8x1xf32> to vector<8x8xf32>
      %184 = arith.divf %180, %183 : vector<8x8xf32>
      %c24 = arith.constant 24 : index
      %c0_126 = arith.constant 0 : index
      %185 = vector.load %arg7[%c24, %c0_126] : memref<32x32xf32, #tpu.memory_space<vmem>>, vector<8x32xf32>
      %cst_127 = arith.constant dense<0.000000e+00> : vector<8x32xf32>
      %186 = tpu.matmul %184, %185, %cst_127 {dimension_numbers = #tpu.dot_dimension_numbers<[1], [0], [0], [1], [0, 0, 1, 1], [], []>} : vector<8x8xf32>, vector<8x32xf32>, vector<8x32xf32> -> vector<8x32xf32>
      %187 = arith.addf %178, %186 : vector<8x32xf32>
      %c0_128 = arith.constant 0 : index
      %c0_129 = arith.constant 0 : index
      %188 = vector.load %arg8[%c0_128, %c0_129] : memref<1x32xf32, #tpu.memory_space<vmem>>, vector<1x32xf32>
      %189 = vector.broadcast %188 : vector<1x32xf32> to vector<8x32xf32>
      %190 = arith.addf %187, %189 : vector<8x32xf32>
      %c0_130 = arith.constant 0 : index
      %c0_131 = arith.constant 0 : index
      %c0_132 = arith.constant 0 : index
      %191 = vector.load %arg9[%c0_130, %c0_131, %c0_132] : memref<1x8x32xf32, #tpu.memory_space<vmem>>, vector<1x8x32xf32>
      %192 = vector.shape_cast %191 : vector<1x8x32xf32> to vector<8x32xf32>
      %193 = vector.shape_cast %190 : vector<8x32xf32> to vector<1x8x32xf32>
      tpu.vector_store %arg9[%c0_130, %c0_131, %c0_132], %193 {strides = array<i32>} : memref<1x8x32xf32, #tpu.memory_space<vmem>>, vector<1x8x32xf32>,
    } else {
    }
    return
  }
  func.func @transform_0(%arg0: i32, %arg1: i32, %arg2: i32) -> (i32, i32, i32) {
    %c0_i32 = arith.constant 0 : i32
    %c0_i32_0 = arith.constant 0 : i32
    return %arg0, %arg1, %c0_i32 : i32, i32, i32
  }
  func.func @transform_1(%arg0: i32, %arg1: i32, %arg2: i32) -> (i32, i32, i32) {
    %c0_i32 = arith.constant 0 : i32
    %c0_i32_0 = arith.constant 0 : i32
    return %arg0, %arg2, %c0_i32 : i32, i32, i32
  }
  func.func @transform_2(%arg0: i32, %arg1: i32, %arg2: i32) -> (i32, i32, i32) {
    %c0_i32 = arith.constant 0 : i32
    %c0_i32_0 = arith.constant 0 : i32
    return %arg0, %arg2, %c0_i32 : i32, i32, i32
  }
  func.func @transform_3(%arg0: i32, %arg1: i32, %arg2: i32) -> (i32, i32) {
    %c0_i32 = arith.constant 0 : i32
    %c0_i32_0 = arith.constant 0 : i32
    %c0_i32_1 = arith.constant 0 : i32
    return %c0_i32, %c0_i32_0 : i32, i32
  }
  func.func @transform_4(%arg0: i32, %arg1: i32, %arg2: i32) -> (i32, i32) {
    %c0_i32 = arith.constant 0 : i32
    %c0_i32_0 = arith.constant 0 : i32
    %c0_i32_1 = arith.constant 0 : i32
    return %c0_i32, %c0_i32_0 : i32, i32
  }
  func.func @transform_5(%arg0: i32, %arg1: i32, %arg2: i32) -> (i32, i32) {
    %c0_i32 = arith.constant 0 : i32
    %c0_i32_0 = arith.constant 0 : i32
    %c0_i32_1 = arith.constant 0 : i32
    return %c0_i32, %c0_i32_0 : i32, i32
  }
  func.func @transform_6(%arg0: i32, %arg1: i32, %arg2: i32) -> (i32, i32, i32) {
    %c0_i32 = arith.constant 0 : i32
    %c0_i32_0 = arith.constant 0 : i32
    return %arg0, %arg1, %c0_i32 : i32, i32, i32
  }
}

</mosaic_0001>

<llo_original>
// kernel: tpu_custom_call.1
$region0: #{tpu_custom_call.1}
  #allocation0 [shape = 'u32[]', space=smem, size = 0x4, offset = 0x4, fixed_abs, tag = 'smem constant byte address 0x4 - core index']
  #allocation1 [shape = 'u32[144,128]{1,0:T(1,128)}', space=vmem, size = 0x12000, scoped, tag = 'internal scratch']
  #allocation2 [shape = 'f32[8,32]{1,0:T(8,128)}', space=vmem, size = 0x1000, scoped, tag = 'scratch operand']
  #allocation3 [shape = 'f32[4,8,1]{2,1,0:T(8,128)}', space=vmem, size = 0x4000, scoped, tag = 'scratch operand']
  #allocation4 [shape = 'f32[4,8,1]{2,1,0:T(8,128)}', space=vmem, size = 0x4000, scoped, tag = 'scratch operand']
  #allocation5 [shape = 'f32[4,8,8]{2,1,0:T(8,128)}', space=vmem, size = 0x4000, scoped, tag = 'scratch operand']
  %s0 = inlined_call_operand.hbm [shape: f32[2,8,32], index: 0, kind: input, shape index: {}]
  %s1 = inlined_call_operand.hbm [shape: f32[2,8,32], index: 1, kind: input, shape index: {}]
  %s2 = inlined_call_operand.hbm [shape: f32[2,8,32], index: 2, kind: input, shape index: {}]
  %s3 = inlined_call_operand.hbm [shape: f32[32,32], index: 3, kind: input, shape index: {}]
  %s4 = inlined_call_operand.hbm [shape: f32[32,32], index: 4, kind: input, shape index: {}]
  %s5 = inlined_call_operand.vmem [shape: f32[1,32], index: 5, kind: input, shape index: {}]
  %s6 = inlined_call_operand.hbm [shape: f32[2,8,32], index: 6, kind: output, shape index: {}]
  %s7 = sld [smem:[#allocation0]]
  $region85: #{tpu_custom_call.1} parent=0
    _
  %s9 = ssub.s32 1, %s7
  %s10 = scalar_select 0, %s9, %s7
  $region1: #{tpu_custom_call.1} parent=0
    #allocation6 [shape = 'u8[8192]{0}', space=vmem, size = 0x2000, scoped, tag = 'input window, operand 0']
    #allocation7 [shape = 's32[2]{0}', space=sflag, size = 0x8, scoped, tag = 'scoped memory for tpu_custom_call.1']
    #allocation8 [shape = 's32[2]{0}', space=sflag, size = 0x8, scoped, tag = 'scoped memory for tpu_custom_call.1']
    #allocation9 [shape = 'u8[8192]{0}', space=vmem, size = 0x2000, scoped, tag = 'input window, operand 1']
    #allocation10 [shape = 's32[2]{0}', space=sflag, size = 0x8, scoped, tag = 'scoped memory for tpu_custom_call.1']
    #allocation11 [shape = 'u8[8192]{0}', space=vmem, size = 0x2000, scoped, tag = 'input window, operand 2']
    #allocation12 [shape = 'u8[16384]{0}', space=vmem, size = 0x4000, scoped, tag = 'input window, operand 3, single buffered']
    #allocation13 [shape = 's32[1]{0}', space=sflag, size = 0x4, scoped, tag = 'scoped memory for tpu_custom_call.1']
    #allocation14 [shape = 'u8[16384]{0}', space=vmem, size = 0x4000, scoped, tag = 'input window, operand 4, single buffered']
    #allocation15 [shape = 'u8[8192]{0}', space=vmem, size = 0x2000, scoped, tag = 'output window, operand 0']
    %11 = vsyncpa [#allocation7], 0
    %s12 = scalar_lea.sflag [#allocation7], 1
    %13 = vsyncpa %s12, 0
    %14 = vsyncpa [#allocation10], 0
    %s15 = scalar_lea.sflag [#allocation10], 1
    %16 = vsyncpa %s15, 0
    %17 = vsyncpa [#allocation13], 0
    %18 = vsyncpa [#allocation8], 0
    %s19 = scalar_lea.sflag [#allocation8], 1
    %20 = vsyncpa %s19, 0
    loop: start=0, step=1, limit=4
    $region2: #{tpu_custom_call.1} parent=1 // loop_pre_header
      _
    $region3: #{tpu_custom_call.1} parent=1 // loop_header
      %s22 = sphi 0, %s26
      %p23 = scmp.ge.s32.totalorder %s22, 4
      %s29 = sphi 0, %s48
      %s30 = sphi 0, %s44
      %s31 = sphi 0, %s40
      %s32 = sphi 0, %s29
      %s33 = sphi 0, %s30
      %s34 = sphi 0, %s31
      %s35 = sphi 0, %s32
      %s36 = sphi 0, %s33
      %s37 = sphi 0, %s34
      %s53 = sphi 0, %s55
      %s56 = sphi 0, %s53
      %s57 = sphi 0, %s56
      %s73 = sphi 0, %s57
      %s81 = sphi 0, %s83
      %s84 = sphi 0, %s81
      %s85 = sphi 0, %s84
      %s101 = sphi 0, %s85
      %s109 = sphi 0, %s111
      %s112 = sphi 0, %s109
      %s113 = sphi 0, %s112
      %s129 = sphi 0, %s113
      %s133 = sphi 0, %s133
      %s135 = sphi 0, %s133
      %s136 = sphi 0, %s135
      %s150 = sphi 0, %s136
      %s154 = sphi 0, %s154
      %s156 = sphi 0, %s154
      %s157 = sphi 0, %s156
      %s171 = sphi 0, %s157
      %s175 = sphi 0, %s175
      %s177 = sphi 0, %s175
      %s178 = sphi 0, %s177
      %s192 = sphi 0, %s178
      %s200 = sphi 0, %s202
      %s203 = sphi 0, %s200
      %s204 = sphi 0, %s203
      %s220 = sphi 0, %s204
    $region4: #{tpu_custom_call.1} parent=1 // loop_header_branch
      %25 = sbr.rel (%p23) target = $region8
    $region5: #{tpu_custom_call.1} parent=1 // loop_body
      %s27 = ssub.s32 %s22, 1
      %s28 = ssub.s32 %s22, 2
      %s38 = sadd.s32 1, %s31
      %p39 = scmp.ge.s32.totalorder %s38, 1
      %s40 = scalar_select %p39, 0, %s38
      %s41 = sadd.s32 1, %s30
      %s42 = scalar_select %p39, %s41, %s30
      %p43 = scmp.ge.s32.totalorder %s42, 1
      %s44 = scalar_select %p43, 0, %s42
      %s45 = sadd.s32 1, %s29
      %s46 = scalar_select %p43, %s45, %s29
      %p47 = scmp.ge.s32.totalorder %s46, 2
      %s48 = scalar_select %p47, 0, %s46
      %s49 = ssub.s32 %s29, %s48
      %s50 = ssub.s32 %s30, %s44
      %s51 = sor.u32 %s49, %s50
      %p52 = scmp.eq.s32.totalorder %s51, 0
      %s54 = sadd.s32 %s53, 1
      %s55 = scalar_select %p52, %s53, %s54
      %p58 = pneg %p52
      %p59 = scmp.eq.s32.totalorder %s22, 1
      %p60 = por %p58, %p59
      %p61 = scmp.ne.s32.totalorder %s53, %s56
      %p62 = scmp.eq.s32.totalorder %s22, 0
      %p63 = por %p61, %p62
      %p64 = scmp.ne.s32.totalorder %s53, %s56
      %p65 = scmp.eq.s32.totalorder %s27, 1
      %p66 = por %p64, %p65
      %p67 = scmp.ne.s32.totalorder %s56, %s57
      %p68 = scmp.eq.s32.totalorder %s27, 0
      %p69 = por %p67, %p68
      %p70 = scmp.ne.s32.totalorder %s56, %s57
      %p71 = scmp.eq.s32.totalorder %s28, 1
      %p72 = por %p70, %p71
      %p74 = scmp.ne.s32.totalorder %s57, %s73
      %p75 = scmp.eq.s32.totalorder %s28, 0
      %p76 = por %p74, %p75
      %s77 = ssub.s32 %s29, %s48
      %s78 = ssub.s32 %s31, %s40
      %s79 = sor.u32 %s77, %s78
      %p80 = scmp.eq.s32.totalorder %s79, 0
      %s82 = sadd.s32 %s81, 1
      %s83 = scalar_select %p80, %s81, %s82
      %p86 = pneg %p80
      %p87 = scmp.eq.s32.totalorder %s22, 1
      %p88 = por %p86, %p87
      %p89 = scmp.ne.s32.totalorder %s81, %s84
      %p90 = scmp.eq.s32.totalorder %s22, 0
      %p91 = por %p89, %p90
      %p92 = scmp.ne.s32.totalorder %s81, %s84
      %p93 = scmp.eq.s32.totalorder %s27, 1
      %p94 = por %p92, %p93
      %p95 = scmp.ne.s32.totalorder %s84, %s85
      %p96 = scmp.eq.s32.totalorder %s27, 0
      %p97 = por %p95, %p96
      %p98 = scmp.ne.s32.totalorder %s84, %s85
      %p99 = scmp.eq.s32.totalorder %s28, 1
      %p100 = por %p98, %p99
      %p102 = scmp.ne.s32.totalorder %s85, %s101
      %p103 = scmp.eq.s32.totalorder %s28, 0
      %p104 = por %p102, %p103
      %s105 = ssub.s32 %s29, %s48
      %s106 = ssub.s32 %s31, %s40
      %s107 = sor.u32 %s105, %s106
      %p108 = scmp.eq.s32.totalorder %s107, 0
      %s110 = sadd.s32 %s109, 1
      %s111 = scalar_select %p108, %s109, %s110
      %p114 = pneg %p108
      %p115 = scmp.eq.s32.totalorder %s22, 1
      %p116 = por %p114, %p115
      %p117 = scmp.ne.s32.totalorder %s109, %s112
      %p118 = scmp.eq.s32.totalorder %s22, 0
      %p119 = por %p117, %p118
      %p120 = scmp.ne.s32.totalorder %s109, %s112
      %p121 = scmp.eq.s32.totalorder %s27, 1
      %p122 = por %p120, %p121
      %p123 = scmp.ne.s32.totalorder %s112, %s113
      %p124 = scmp.eq.s32.totalorder %s27, 0
      %p125 = por %p123, %p124
      %p126 = scmp.ne.s32.totalorder %s112, %s113
      %p127 = scmp.eq.s32.totalorder %s28, 1
      %p128 = por %p126, %p127
      %p130 = scmp.ne.s32.totalorder %s113, %s129
      %p131 = scmp.eq.s32.totalorder %s28, 0
      %p132 = por %p130, %p131
      %s134 = sadd.s32 %s133, 1
      %p137 = scmp.eq.s32.totalorder %s22, 1
      %p138 = scmp.ne.s32.totalorder %s133, %s135
      %p139 = scmp.eq.s32.totalorder %s22, 0
      %p140 = por %p138, %p139
      %p141 = scmp.ne.s32.totalorder %s133, %s135
      %p142 = scmp.eq.s32.totalorder %s27, 1
      %p143 = por %p141, %p142
      %p144 = scmp.ne.s32.totalorder %s135, %s136
      %p145 = scmp.eq.s32.totalorder %s27, 0
      %p146 = por %p144, %p145
      %p147 = scmp.ne.s32.totalorder %s135, %s136
      %p148 = scmp.eq.s32.totalorder %s28, 1
      %p149 = por %p147, %p148
      %p151 = scmp.ne.s32.totalorder %s136, %s150
      %p152 = scmp.eq.s32.totalorder %s28, 0
      %p153 = por %p151, %p152
      %s155 = sadd.s32 %s154, 1
      %p158 = scmp.eq.s32.totalorder %s22, 1
      %p159 = scmp.ne.s32.totalorder %s154, %s156
      %p160 = scmp.eq.s32.totalorder %s22, 0
      %p161 = por %p159, %p160
      %p162 = scmp.ne.s32.totalorder %s154, %s156
      %p163 = scmp.eq.s32.totalorder %s27, 1
      %p164 = por %p162, %p163
      %p165 = scmp.ne.s32.totalorder %s156, %s157
      %p166 = scmp.eq.s32.totalorder %s27, 0
      %p167 = por %p165, %p166
      %p168 = scmp.ne.s32.totalorder %s156, %s157
      %p169 = scmp.eq.s32.totalorder %s28, 1
      %p170 = por %p168, %p169
      %p172 = scmp.ne.s32.totalorder %s157, %s171
      %p173 = scmp.eq.s32.totalorder %s28, 0
      %p174 = por %p172, %p173
      %s176 = sadd.s32 %s175, 1
      %p179 = scmp.eq.s32.totalorder %s22, 1
      %p180 = scmp.ne.s32.totalorder %s175, %s177
      %p181 = scmp.eq.s32.totalorder %s22, 0
      %p182 = por %p180, %p181
      %p183 = scmp.ne.s32.totalorder %s175, %s177
      %p184 = scmp.eq.s32.totalorder %s27, 1
      %p185 = por %p183, %p184
      %p186 = scmp.ne.s32.totalorder %s177, %s178
      %p187 = scmp.eq.s32.totalorder %s27, 0
      %p188 = por %p186, %p187
      %p189 = scmp.ne.s32.totalorder %s177, %s178
      %p190 = scmp.eq.s32.totalorder %s28, 1
      %p191 = por %p189, %p190
      %p193 = scmp.ne.s32.totalorder %s178, %s192
      %p194 = scmp.eq.s32.totalorder %s28, 0
      %p195 = por %p193, %p194
      %s196 = ssub.s32 %s29, %s48
      %s197 = ssub.s32 %s30, %s44
      %s198 = sor.u32 %s196, %s197
      %p199 = scmp.eq.s32.totalorder %s198, 0
      %s201 = sadd.s32 %s200, 1
      %s202 = scalar_select %p199, %s200, %s201
      %p205 = pneg %p199
      %p206 = scmp.eq.s32.totalorder %s22, 1
      %p207 = por %p205, %p206
      %p208 = scmp.ne.s32.totalorder %s200, %s203
      %p209 = scmp.eq.s32.totalorder %s22, 0
      %p210 = por %p208, %p209
      %p211 = scmp.ne.s32.totalorder %s200, %s203
      %p212 = scmp.eq.s32.totalorder %s27, 1
      %p213 = por %p211, %p212
      %p214 = scmp.ne.s32.totalorder %s203, %s204
      %p215 = scmp.eq.s32.totalorder %s27, 0
      %p216 = por %p214, %p215
      %p217 = scmp.ne.s32.totalorder %s203, %s204
      %p218 = scmp.eq.s32.totalorder %s28, 1
      %p219 = por %p217, %p218
      %p221 = scmp.ne.s32.totalorder %s204, %s220
      %p222 = scmp.eq.s32.totalorder %s28, 0
      %p223 = por %p221, %p222
      %p224 = scmp.le.s32.totalorder 1, %s22
      %p225 = scmp.lt.s32.totalorder %s22, 3
      %p226 = pnand %p224, %p225
      %p227 = pneg %p226
      // Predicated region
      $region9: #{tpu_custom_call.1} parent=5 // pred_check
        _
      $region10: #{tpu_custom_call.1} parent=5 // pred_check_branch
        %229 = sbr.rel (%p226) target = $region12
      $region11: #{tpu_custom_call.1} parent=5 // pred_region
        %s230 = ssub.s32 %s22, 1
        // Predicated region
        $region13: #{tpu_custom_call.1} parent=11 // pred_check
          %p231 = pneg %p146
        $region14: #{tpu_custom_call.1} parent=11 // pred_check_branch
          %233 = sbr.rel (%p231) target = $region16
        $region15: #{tpu_custom_call.1} parent=11 // pred_region
          %s235 = ssub.s32 512, 512
          %236 = vsyncadd [#allocation13], %s235
          %s237 = sshll.u32 [#allocation12], 4
          %s238 = int_to_ptr.vmem [resolvable:$true] %s237
          %243 = dma.hbm_to_vmem [thread:$0]  %s3, 512, %s238, [#allocation13], 128, 128, 8
        $region16: #{tpu_custom_call.1} parent=11 // pred_fallthru
          _
        // Predicated region
        $region17: #{tpu_custom_call.1} parent=11 // pred_check
          %p244 = pneg %p167
        $region18: #{tpu_custom_call.1} parent=11 // pred_check_branch
          %246 = sbr.rel (%p244) target = $region20
        $region19: #{tpu_custom_call.1} parent=11 // pred_region
          %s248 = ssub.s32 512, 512
          %249 = vsyncadd [#allocation13], %s248
          %s250 = sshll.u32 [#allocation14], 4
          %s251 = int_to_ptr.vmem [resolvable:$true] %s250
          %256 = dma.hbm_to_vmem [thread:$0]  %s4, 512, %s251, [#allocation13], 128, 128, 8
        $region20: #{tpu_custom_call.1} parent=11 // pred_fallthru
          _
        // Predicated region
        $region21: #{tpu_custom_call.1} parent=11 // pred_check
          %p257 = pneg %p188
        $region22: #{tpu_custom_call.1} parent=11 // pred_check_branch
          %259 = sbr.rel (%p257) target = $region24
        $region23: #{tpu_custom_call.1} parent=11 // pred_region
          _
        $region24: #{tpu_custom_call.1} parent=11 // pred_fallthru
          _
      $region12: #{tpu_custom_call.1} parent=5 // pred_fallthru
        _
      %p260 = scmp.lt.s32.totalorder %s22, 2
      // Predicated region
      $region25: #{tpu_custom_call.1} parent=5 // pred_check
        %p261 = pneg %p260
      $region26: #{tpu_custom_call.1} parent=5 // pred_check_branch
        %263 = sbr.rel (%p261) target = $region28
      $region27: #{tpu_custom_call.1} parent=5 // pred_region
        // Predicated region
        $region29: #{tpu_custom_call.1} parent=27 // pred_check
          %p264 = pneg %p63
        $region30: #{tpu_custom_call.1} parent=27 // pred_check_branch
          %266 = sbr.rel (%p264) target = $region32
        $region31: #{tpu_custom_call.1} parent=27 // pred_region
          %s267 = sand.u32 %s53, 1
          %s268 = scalar_lea.sflag [#allocation7], %s267
          %s269 = sand.u32 %s53, 1
          %s270 = smul.addr %s269, 8
          %s271 = scalar_lea.vmem [#allocation6], %s270
          %s273 = ssub.s32 128, 128
          %274 = vsyncadd %s268, %s273
          %s275 = sadd.s32 %s30, %s29
          %s276 = smul.addr %s275, 128
          %s277 = scalar_lea.hbm %s0, %s276
          %s279 = sshll.u32 %s271, 4
          %s280 = int_to_ptr.vmem [resolvable:$true] %s279
          %282 = dma.hbm_to_vmem [thread:$0]  %s277, 128, %s280, %s268
        $region32: #{tpu_custom_call.1} parent=27 // pred_fallthru
          _
        // Predicated region
        $region33: #{tpu_custom_call.1} parent=27 // pred_check
          %p283 = pneg %p91
        $region34: #{tpu_custom_call.1} parent=27 // pred_check_branch
          %285 = sbr.rel (%p283) target = $region36
        $region35: #{tpu_custom_call.1} parent=27 // pred_region
          %s286 = sand.u32 %s22, 1
          %s287 = scalar_lea.sflag [#allocation10], %s286
          %s288 = sand.u32 %s81, 1
          %s289 = smul.addr %s288, 8
          %s290 = scalar_lea.vmem [#allocation9], %s289
          %s292 = ssub.s32 128, 128
          %293 = vsyncadd %s287, %s292
          %s294 = sadd.s32 %s31, %s29
          %s295 = smul.addr %s294, 128
          %s296 = scalar_lea.hbm %s1, %s295
          %s298 = sshll.u32 %s290, 4
          %s299 = int_to_ptr.vmem [resolvable:$true] %s298
          %301 = dma.hbm_to_vmem [thread:$0]  %s296, 128, %s299, %s287
        $region36: #{tpu_custom_call.1} parent=27 // pred_fallthru
          _
        // Predicated region
        $region37: #{tpu_custom_call.1} parent=27 // pred_check
          %p302 = pneg %p119
        $region38: #{tpu_custom_call.1} parent=27 // pred_check_branch
          %304 = sbr.rel (%p302) target = $region40
        $region39: #{tpu_custom_call.1} parent=27 // pred_region
          %s305 = sand.u32 %s22, 1
          %s306 = scalar_lea.sflag [#allocation10], %s305
          %s307 = sand.u32 %s109, 1
          %s308 = smul.addr %s307, 8
          %s309 = scalar_lea.vmem [#allocation11], %s308
          %s311 = ssub.s32 128, 128
          %312 = vsyncadd %s306, %s311
          %s313 = sadd.s32 %s31, %s29
          %s314 = smul.addr %s313, 128
          %s315 = scalar_lea.hbm %s2, %s314
          %s317 = sshll.u32 %s309, 4
          %s318 = int_to_ptr.vmem [resolvable:$true] %s317
          %320 = dma.hbm_to_vmem [thread:$0]  %s315, 128, %s318, %s306
        $region40: #{tpu_custom_call.1} parent=27 // pred_fallthru
          _
      $region28: #{tpu_custom_call.1} parent=5 // pred_fallthru
        _
      %p321 = scmp.le.s32.totalorder 1, %s22
      %p322 = scmp.lt.s32.totalorder %s22, 3
      %p323 = pnand %p321, %p322
      %p324 = pneg %p323
      // Predicated region
      $region41: #{tpu_custom_call.1} parent=5 // pred_check
        _
      $region42: #{tpu_custom_call.1} parent=5 // pred_check_branch
        %326 = sbr.rel (%p323) target = $region44
      $region43: #{tpu_custom_call.1} parent=5 // pred_region
        %s327 = ssub.s32 %s22, 1
        %s328 = sand.u32 %s56, 1
        %s329 = scalar_lea.sflag [#allocation7], %s328
        %s330 = sand.u32 %s56, 1
        %s331 = smul.addr %s330, 8
        %s332 = scalar_lea.vmem [#allocation6], %s331
        // Predicated region
        $region45: #{tpu_custom_call.1} parent=43 // pred_check
          %p333 = pneg %p69
        $region46: #{tpu_custom_call.1} parent=43 // pred_check_branch
          %335 = sbr.rel (%p333) target = $region48
        $region47: #{tpu_custom_call.1} parent=43 // pred_region
          %336 = dma.done %s329, 128
        $region48: #{tpu_custom_call.1} parent=43 // pred_fallthru
          _
        %s337 = sand.u32 %s27, 1
        %s338 = scalar_lea.sflag [#allocation10], %s337
        %s339 = sand.u32 %s84, 1
        %s340 = smul.addr %s339, 8
        %s341 = scalar_lea.vmem [#allocation9], %s340
        // Predicated region
        $region49: #{tpu_custom_call.1} parent=43 // pred_check
          %p342 = pneg %p97
        $region50: #{tpu_custom_call.1} parent=43 // pred_check_branch
          %344 = sbr.rel (%p342) target = $region52
        $region51: #{tpu_custom_call.1} parent=43 // pred_region
          %345 = dma.done %s338, 128
        $region52: #{tpu_custom_call.1} parent=43 // pred_fallthru
          _
        %s346 = sand.u32 %s27, 1
        %s347 = scalar_lea.sflag [#allocation10], %s346
        %s348 = sand.u32 %s112, 1
        %s349 = smul.addr %s348, 8
        %s350 = scalar_lea.vmem [#allocation11], %s349
        // Predicated region
        $region53: #{tpu_custom_call.1} parent=43 // pred_check
          %p351 = pneg %p125
        $region54: #{tpu_custom_call.1} parent=43 // pred_check_branch
          %353 = sbr.rel (%p351) target = $region56
        $region55: #{tpu_custom_call.1} parent=43 // pred_region
          %354 = dma.done %s347, 128
        $region56: #{tpu_custom_call.1} parent=43 // pred_fallthru
          _
        // Predicated region
        $region57: #{tpu_custom_call.1} parent=43 // pred_check
          %p355 = pneg %p146
        $region58: #{tpu_custom_call.1} parent=43 // pred_check_branch
          %357 = sbr.rel (%p355) target = $region60
        $region59: #{tpu_custom_call.1} parent=43 // pred_region
          %358 = dma.done [#allocation13], 512
        $region60: #{tpu_custom_call.1} parent=43 // pred_fallthru
          _
        // Predicated region
        $region61: #{tpu_custom_call.1} parent=43 // pred_check
          %p359 = pneg %p167
        $region62: #{tpu_custom_call.1} parent=43 // pred_check_branch
          %361 = sbr.rel (%p359) target = $region64
        $region63: #{tpu_custom_call.1} parent=43 // pred_region
          %362 = dma.done [#allocation13], 512
        $region64: #{tpu_custom_call.1} parent=43 // pred_fallthru
          _
        %s363 = sand.u32 %s56, 1
        %s364 = scalar_lea.sflag [#allocation7], %s363
        %s365 = sand.u32 %s56, 1
        %s366 = smul.addr %s365, 8
        %s367 = scalar_lea.vmem [#allocation6], %s366
        %p368 = pneg %p69
        %p369 = pneg %p66
        %s370 = sand.u32 %s27, 1
        %s371 = scalar_lea.sflag [#allocation10], %s370
        %s372 = sand.u32 %s84, 1
        %s373 = smul.addr %s372, 8
        %s374 = scalar_lea.vmem [#allocation9], %s373
        %p375 = pneg %p97
        %p376 = pneg %p94
        %s377 = sand.u32 %s27, 1
        %s378 = scalar_lea.sflag [#allocation10], %s377
        %s379 = sand.u32 %s112, 1
        %s380 = smul.addr %s379, 8
        %s381 = scalar_lea.vmem [#allocation11], %s380
        %p382 = pneg %p125
        %p383 = pneg %p122
        %p384 = pneg %p146
        %p385 = pneg %p143
        %p386 = pneg %p167
        %p387 = pneg %p164
        %p388 = pneg %p188
        %p389 = pneg %p185
        %p390 = pneg %p216
        %p391 = pneg %p213
        %s392 = sand.u32 %s203, 1
        %s393 = scalar_lea.sflag [#allocation8], %s392
        %s394 = sand.u32 %s203, 1
        %s395 = smul.addr %s394, 8
        %s396 = scalar_lea.vmem [#allocation15], %s395
        %p397 = scmp.eq.s32.totalorder %s34, 0
        // Predicated region
        $region65: #{tpu_custom_call.1} parent=43 // pred_check
          %p398 = pneg %p397
        $region66: #{tpu_custom_call.1} parent=43 // pred_check_branch
          %400 = sbr.rel (%p398) target = $region68
        $region67: #{tpu_custom_call.1} parent=43 // pred_region
          %v401 = vld [vmem:[%s332] sm:$0xff]
          %v402 = vld [vmem:[#allocation12] sm:$0xff]
          %v403 = vld [vmem:[#allocation12 + $0x8] sm:$0xff]
          %v404 = vld [vmem:[#allocation12 + $0x10] sm:$0xff]
          %v405 = vld [vmem:[#allocation12 + $0x18] sm:$0xff]
          %vm406 = vcmask 261120
          %v408 = vsel %vm406, %v401, 0
          %410 = vmatprep.subr.mxu0 0.0
          %411 = vmatpush1.msra.mxu0 %v402
          %412 = vmatprep.subr.mxu0 0.0
          %413 = vmatpush1.msra.mxu0 %v403
          %414 = vmatprep.subr.mxu0 0.0
          %415 = vmatpush1.msra.mxu0 %v404
          %416 = vmatprep.subr.mxu0 0.0
          %417 = vmatpush1.msra.mxu0 %v405
          %418 = vmatprep.subr.mxu0 0.0
          %419 = vmatpush1.msra.mxu0 0.0
          %420 = vmatprep.subr.mxu0 0.0
          %421 = vmatpush1.msra.mxu0 0.0
          %422 = vmatprep.subr.mxu0 0.0
          %423 = vmatpush1.msra.mxu0 0.0
          %424 = vmatprep.subr.mxu0 0.0
          %425 = vmatpush1.msra.mxu0 0.0
          %426 = vmatprep.subr.mxu0 0.0
          %427 = vmatpush1.msra.mxu0 0.0
          %428 = vmatprep.subr.mxu0 0.0
          %429 = vmatpush1.msra.mxu0 0.0
          %430 = vmatprep.subr.mxu0 0.0
          %431 = vmatpush1.msra.mxu0 0.0
          %432 = vmatprep.subr.mxu0 0.0
          %433 = vmatpush1.msra.mxu0 0.0
          %434 = vmatprep.subr.mxu0 0.0
          %435 = vmatpush1.msra.mxu0 0.0
          %436 = vmatprep.subr.mxu0 0.0
          %437 = vmatpush1.msra.mxu0 0.0
          %438 = vmatprep.subr.mxu0 0.0
          %439 = vmatpush1.msra.mxu0 0.0
          %440 = vmatprep.subr.mxu0 0.0
          %441 = vmatpush1.msra.mxu0 0.0
          %442 = vmatprep.subr.mxu0 0.0
          %443 = vmatpush1.msra.mxu0 0.0
          %444 = vmatprep.subr.mxu0 0.0
          %445 = vmatpush1.msra.mxu0 0.0
          %446 = vmatprep.subr.mxu0 0.0
          %447 = vmatpush1.msra.mxu0 0.0
          %448 = vmatprep.subr.mxu0 0.0
          %449 = vmatpush1.msra.mxu0 0.0
          %450 = vmatprep.subr.mxu0 0.0
          %451 = vmatpush1.msra.mxu0 0.0
          %452 = vmatprep.subr.mxu0 0.0
          %453 = vmatpush1.msra.mxu0 0.0
          %454 = vmatprep.subr.mxu0 0.0
          %455 = vmatpush1.msra.mxu0 0.0
          %456 = vmatprep.subr.mxu0 0.0
          %457 = vmatpush1.msra.mxu0 0.0
          %458 = vmatprep.subr.mxu0 0.0
          %459 = vmatpush1.msra.mxu0 0.0
          %460 = vmatprep.subr.mxu0 0.0
          %461 = vmatpush1.msra.mxu0 0.0
          %462 = vmatprep.subr.mxu0 0.0
          %463 = vmatpush1.msra.mxu0 0.0
          %464 = vmatprep.subr.mxu0 0.0
          %465 = vmatpush1.msra.mxu0 0.0
          %466 = vmatprep.subr.mxu0 0.0
          %467 = vmatpush1.msra.mxu0 0.0
          %468 = vmatprep.subr.mxu0 0.0
          %469 = vmatpush1.msra.mxu0 0.0
          %470 = vmatprep.subr.mxu0 0.0
          %471 = vmatpush1.msra.mxu0 0.0
          %472 = vmatprep.subr.mxu0 0.0
          %473 = vmatpush1.msra.mxu0 0.0
          %474 = vmatprep.mubr.f32.mxu0 0.0
          %475 = vmatmul.mubr.f32.gmra.mrb[0].mxu0 %v408
          %v476 = vpop.f32.mrb[0].mxu0
          %v477 = vadd.f32 0.0, %v476
          %v478 = vpop.f32.mrb[0].mxu0
          %479 = vdwg.mxu0
          %480 = vst.msk [vmem:[#allocation2] sm:$0xff] %vm406, %v477
          %vm481 = vcmask 7168
          %482 = vst.msk [vmem:[#allocation3] sm:$0xff] %vm481, -inf
          %483 = vst.msk [vmem:[#allocation3 + $0x8] sm:$0xff] %vm481, -inf
          %484 = vst.msk [vmem:[#allocation3 + $0x10] sm:$0xff] %vm481, -inf
          %485 = vst.msk [vmem:[#allocation3 + $0x18] sm:$0xff] %vm481, -inf
          %486 = vst.msk [vmem:[#allocation4] sm:$0xff] %vm481, 0.0
          %487 = vst.msk [vmem:[#allocation4 + $0x8] sm:$0xff] %vm481, 0.0
          %488 = vst.msk [vmem:[#allocation4 + $0x10] sm:$0xff] %vm481, 0.0
          %489 = vst.msk [vmem:[#allocation4 + $0x18] sm:$0xff] %vm481, 0.0
          %vm490 = vcmask 64512
          %491 = vst.msk [vmem:[#allocation5] sm:$0xff] %vm490, 0.0
          %492 = vst.msk [vmem:[#allocation5 + $0x8] sm:$0xff] %vm490, 0.0
          %493 = vst.msk [vmem:[#allocation5 + $0x10] sm:$0xff] %vm490, 0.0
          %494 = vst.msk [vmem:[#allocation5 + $0x18] sm:$0xff] %vm490, 0.0
        $region68: #{tpu_custom_call.1} parent=43 // pred_fallthru
          _
        %v495 = vld [vmem:[%s341] sm:$0xff]
        %v496 = vld [vmem:[%s350] sm:$0xff]
        %v497 = vld [vmem:[#allocation2] sm:$0xff]
        %vm498 = vcmask 64512
        %v500 = vsel %vm498, %v497, 0
        %v503 = vsel %vm498, %v495, 0
        %505 = vmatprep.subr.mxu0 0.0
        %506 = vmatpush1.xpose.msra.mxu0 %v503
        %507 = vmatprep.subr.mxu0 0.0
        %508 = vmatpush1.xpose.msra.mxu0 0.0
        %509 = vmatprep.subr.mxu0 0.0
        %510 = vmatpush1.xpose.msra.mxu0 0.0
        %511 = vmatprep.subr.mxu0 0.0
        %512 = vmatpush1.xpose.msra.mxu0 0.0
        %513 = vmatprep.subr.mxu0 0.0
        %514 = vmatpush1.xpose.msra.mxu0 0.0
        %515 = vmatprep.subr.mxu0 0.0
        %516 = vmatpush1.xpose.msra.mxu0 0.0
        %517 = vmatprep.subr.mxu0 0.0
        %518 = vmatpush1.xpose.msra.mxu0 0.0
        %519 = vmatprep.subr.mxu0 0.0
        %520 = vmatpush1.xpose.msra.mxu0 0.0
        %521 = vmatprep.subr.mxu0 0.0
        %522 = vmatpush1.xpose.msra.mxu0 0.0
        %523 = vmatprep.subr.mxu0 0.0
        %524 = vmatpush1.xpose.msra.mxu0 0.0
        %525 = vmatprep.subr.mxu0 0.0
        %526 = vmatpush1.xpose.msra.mxu0 0.0
        %527 = vmatprep.subr.mxu0 0.0
        %528 = vmatpush1.xpose.msra.mxu0 0.0
        %529 = vmatprep.subr.mxu0 0.0
        %530 = vmatpush1.xpose.msra.mxu0 0.0
        %531 = vmatprep.subr.mxu0 0.0
        %532 = vmatpush1.xpose.msra.mxu0 0.0
        %533 = vmatprep.subr.mxu0 0.0
        %534 = vmatpush1.xpose.msra.mxu0 0.0
        %535 = vmatprep.subr.mxu0 0.0
        %536 = vmatpush1.xpose.msra.mxu0 0.0
        %537 = vmatprep.subr.mxu0 0.0
        %538 = vmatpush1.xpose.msra.mxu0 0.0
        %539 = vmatprep.subr.mxu0 0.0
        %540 = vmatpush1.xpose.msra.mxu0 0.0
        %541 = vmatprep.subr.mxu0 0.0
        %542 = vmatpush1.xpose.msra.mxu0 0.0
        %543 = vmatprep.subr.mxu0 0.0
        %544 = vmatpush1.xpose.msra.mxu0 0.0
        %545 = vmatprep.subr.mxu0 0.0
        %546 = vmatpush1.xpose.msra.mxu0 0.0
        %547 = vmatprep.subr.mxu0 0.0
        %548 = vmatpush1.xpose.msra.mxu0 0.0
        %549 = vmatprep.subr.mxu0 0.0
        %550 = vmatpush1.xpose.msra.mxu0 0.0
        %551 = vmatprep.subr.mxu0 0.0
        %552 = vmatpush1.xpose.msra.mxu0 0.0
        %553 = vmatprep.subr.mxu0 0.0
        %554 = vmatpush1.xpose.msra.mxu0 0.0
        %555 = vmatprep.subr.mxu0 0.0
        %556 = vmatpush1.xpose.msra.mxu0 0.0
        %557 = vmatprep.subr.mxu0 0.0
        %558 = vmatpush1.xpose.msra.mxu0 0.0
        %559 = vmatprep.subr.mxu0 0.0
        %560 = vmatpush1.xpose.msra.mxu0 0.0
        %561 = vmatprep.subr.mxu0 0.0
        %562 = vmatpush1.xpose.msra.mxu0 0.0
        %563 = vmatprep.subr.mxu0 0.0
        %564 = vmatpush1.xpose.msra.mxu0 0.0
        %565 = vmatprep.subr.mxu0 0.0
        %566 = vmatpush1.xpose.msra.mxu0 0.0
        %567 = vmatprep.subr.mxu0 0.0
        %568 = vmatpush1.xpose.msra.mxu0 0.0
        %569 = vmatprep.mubr.f32.mxu0 0.0
        %570 = vmatmul.mubr.f32.gmra.mrb[0].mxu0 %v500
        %v571 = vpop.f32.mrb[0].mxu0
        %v572 = vadd.f32 0.0, %v571
        %v573 = vpop.f32.mrb[0].mxu0
        %574 = vdwg.mxu0
        %v575 = vld [vmem:[#allocation3] sm:$0xff]
        %v576 = vsel %vm498, %v572, -inf
        %577 = vmax.xlane.f32.xlu0 %v576
        %v578 = vpop.xlane.xlu0 %577
        %v579 = vmax.f32 %v575, %v578
        %v580 = vsub.f32 %v575, %v579
        %v581 = vmul.f32 %v580, 1.442695
        %v582 = vpow.pop %v581
        %584 = vset.pattern.permute.xlu0 0
        %585 = vperm.xlu0 %584, %v579
        %v586 = vpop.permute.xlu0 %585
        %v588 = vsub.f32 %v572, %v586
        %v589 = vmul.f32 %v588, 1.442695
        %v590 = vpow.pop %v589
        %v591 = vld [vmem:[#allocation4] sm:$0xff]
        %v592 = vmul.f32 %v582, %v591
        %v593 = vsel %vm498, %v590, 0.0
        %594 = vadd.xlane.f32.xlu0 %v593
        %v595 = vpop.xlane.xlu0 %594
        %v596 = vadd.f32 %v592, %v595
        %vm597 = vcmask 7168
        %598 = vst.msk [vmem:[#allocation4] sm:$0xff] %vm597, %v596
        %v599 = vld [vmem:[#allocation5] sm:$0xff]
        %601 = vset.pattern.permute.xlu0 0
        %602 = vperm.xlu0 %601, %v582
        %v603 = vpop.permute.xlu0 %602
        %v605 = vmul.f32 %v603, %v599
        %v607 = vsel %vm498, %v590, 0
        %609 = vmatprep.subr.mxu0 0.0
        %610 = vmatpush1.msra.mxu0 %v496
        %611 = vmatprep.subr.mxu0 0.0
        %612 = vmatpush1.msra.mxu0 0.0
        %613 = vmatprep.subr.mxu0 0.0
        %614 = vmatpush1.msra.mxu0 0.0
        %615 = vmatprep.subr.mxu0 0.0
        %616 = vmatpush1.msra.mxu0 0.0
        %617 = vmatprep.subr.mxu0 0.0
        %618 = vmatpush1.msra.mxu0 0.0
        %619 = vmatprep.subr.mxu0 0.0
        %620 = vmatpush1.msra.mxu0 0.0
        %621 = vmatprep.subr.mxu0 0.0
        %622 = vmatpush1.msra.mxu0 0.0
        %623 = vmatprep.subr.mxu0 0.0
        %624 = vmatpush1.msra.mxu0 0.0
        %625 = vmatprep.subr.mxu0 0.0
        %626 = vmatpush1.msra.mxu0 0.0
        %627 = vmatprep.subr.mxu0 0.0
        %628 = vmatpush1.msra.mxu0 0.0
        %629 = vmatprep.subr.mxu0 0.0
        %630 = vmatpush1.msra.mxu0 0.0
        %631 = vmatprep.subr.mxu0 0.0
        %632 = vmatpush1.msra.mxu0 0.0
        %633 = vmatprep.subr.mxu0 0.0
        %634 = vmatpush1.msra.mxu0 0.0
        %635 = vmatprep.subr.mxu0 0.0
        %636 = vmatpush1.msra.mxu0 0.0
        %637 = vmatprep.subr.mxu0 0.0
        %638 = vmatpush1.msra.mxu0 0.0
        %639 = vmatprep.subr.mxu0 0.0
        %640 = vmatpush1.msra.mxu0 0.0
        %641 = vmatprep.subr.mxu0 0.0
        %642 = vmatpush1.msra.mxu0 0.0
        %643 = vmatprep.subr.mxu0 0.0
        %644 = vmatpush1.msra.mxu0 0.0
        %645 = vmatprep.subr.mxu0 0.0
        %646 = vmatpush1.msra.mxu0 0.0
        %647 = vmatprep.subr.mxu0 0.0
        %648 = vmatpush1.msra.mxu0 0.0
        %649 = vmatprep.subr.mxu0 0.0
        %650 = vmatpush1.msra.mxu0 0.0
        %651 = vmatprep.subr.mxu0 0.0
        %652 = vmatpush1.msra.mxu0 0.0
        %653 = vmatprep.subr.mxu0 0.0
        %654 = vmatpush1.msra.mxu0 0.0
        %655 = vmatprep.subr.mxu0 0.0
        %656 = vmatpush1.msra.mxu0 0.0
        %657 = vmatprep.subr.mxu0 0.0
        %658 = vmatpush1.msra.mxu0 0.0
        %659 = vmatprep.subr.mxu0 0.0
        %660 = vmatpush1.msra.mxu0 0.0
        %661 = vmatprep.subr.mxu0 0.0
        %662 = vmatpush1.msra.mxu0 0.0
        %663 = vmatprep.subr.mxu0 0.0
        %664 = vmatpush1.msra.mxu0 0.0
        %665 = vmatprep.subr.mxu0 0.0
        %666 = vmatpush1.msra.mxu0 0.0
        %667 = vmatprep.subr.mxu0 0.0
        %668 = vmatpush1.msra.mxu0 0.0
        %669 = vmatprep.subr.mxu0 0.0
        %670 = vmatpush1.msra.mxu0 0.0
        %671 = vmatprep.subr.mxu0 0.0
        %672 = vmatpush1.msra.mxu0 0.0
        %673 = vmatprep.mubr.f32.mxu0 0.0
        %674 = vmatmul.mubr.f32.gmra.mrb[0].mxu0 %v607
        %v675 = vpop.f32.mrb[0].mxu0
        %v676 = vadd.f32 0.0, %v675
        %v677 = vpop.f32.mrb[0].mxu0
        %678 = vdwg.mxu0
        %v679 = vadd.f32 %v605, %v676
        %680 = vst.msk [vmem:[#allocation5] sm:$0xff] %vm498, %v679
        %681 = vst.msk [vmem:[#allocation3] sm:$0xff] %vm597, %v579
        %682 = vrot.lane.b32.xlu0 %v497, 120
        %v683 = vpop.permute.xlu0 %682
        %684 = vrot.lane.b32.xlu0 %v495, 120
        %v685 = vpop.permute.xlu0 %684
        %v686 = vsel %vm498, %v683, 0
        %v688 = vsel %vm498, %v685, 0
        %690 = vmatprep.subr.mxu0 0.0
        %691 = vmatpush1.xpose.msra.mxu0 %v688
        %692 = vmatprep.subr.mxu0 0.0
        %693 = vmatpush1.xpose.msra.mxu0 0.0
        %694 = vmatprep.subr.mxu0 0.0
        %695 = vmatpush1.xpose.msra.mxu0 0.0
        %696 = vmatprep.subr.mxu0 0.0
        %697 = vmatpush1.xpose.msra.mxu0 0.0
        %698 = vmatprep.subr.mxu0 0.0
        %699 = vmatpush1.xpose.msra.mxu0 0.0
        %700 = vmatprep.subr.mxu0 0.0
        %701 = vmatpush1.xpose.msra.mxu0 0.0
        %702 = vmatprep.subr.mxu0 0.0
        %703 = vmatpush1.xpose.msra.mxu0 0.0
        %704 = vmatprep.subr.mxu0 0.0
        %705 = vmatpush1.xpose.msra.mxu0 0.0
        %706 = vmatprep.subr.mxu0 0.0
        %707 = vmatpush1.xpose.msra.mxu0 0.0
        %708 = vmatprep.subr.mxu0 0.0
        %709 = vmatpush1.xpose.msra.mxu0 0.0
        %710 = vmatprep.subr.mxu0 0.0
        %711 = vmatpush1.xpose.msra.mxu0 0.0
        %712 = vmatprep.subr.mxu0 0.0
        %713 = vmatpush1.xpose.msra.mxu0 0.0
        %714 = vmatprep.subr.mxu0 0.0
        %715 = vmatpush1.xpose.msra.mxu0 0.0
        %716 = vmatprep.subr.mxu0 0.0
        %717 = vmatpush1.xpose.msra.mxu0 0.0
        %718 = vmatprep.subr.mxu0 0.0
        %719 = vmatpush1.xpose.msra.mxu0 0.0
        %720 = vmatprep.subr.mxu0 0.0
        %721 = vmatpush1.xpose.msra.mxu0 0.0
        %722 = vmatprep.subr.mxu0 0.0
        %723 = vmatpush1.xpose.msra.mxu0 0.0
        %724 = vmatprep.subr.mxu0 0.0
        %725 = vmatpush1.xpose.msra.mxu0 0.0
        %726 = vmatprep.subr.mxu0 0.0
        %727 = vmatpush1.xpose.msra.mxu0 0.0
        %728 = vmatprep.subr.mxu0 0.0
        %729 = vmatpush1.xpose.msra.mxu0 0.0
        %730 = vmatprep.subr.mxu0 0.0
        %731 = vmatpush1.xpose.msra.mxu0 0.0
        %732 = vmatprep.subr.mxu0 0.0
        %733 = vmatpush1.xpose.msra.mxu0 0.0
        %734 = vmatprep.subr.mxu0 0.0
        %735 = vmatpush1.xpose.msra.mxu0 0.0
        %736 = vmatprep.subr.mxu0 0.0
        %737 = vmatpush1.xpose.msra.mxu0 0.0
        %738 = vmatprep.subr.mxu0 0.0
        %739 = vmatpush1.xpose.msra.mxu0 0.0
        %740 = vmatprep.subr.mxu0 0.0
        %741 = vmatpush1.xpose.msra.mxu0 0.0
        %742 = vmatprep.subr.mxu0 0.0
        %743 = vmatpush1.xpose.msra.mxu0 0.0
        %744 = vmatprep.subr.mxu0 0.0
        %745 = vmatpush1.xpose.msra.mxu0 0.0
        %746 = vmatprep.subr.mxu0 0.0
        %747 = vmatpush1.xpose.msra.mxu0 0.0
        %748 = vmatprep.subr.mxu0 0.0
        %749 = vmatpush1.xpose.msra.mxu0 0.0
        %750 = vmatprep.subr.mxu0 0.0
        %751 = vmatpush1.xpose.msra.mxu0 0.0
        %752 = vmatprep.subr.mxu0 0.0
        %753 = vmatpush1.xpose.msra.mxu0 0.0
        %754 = vmatprep.mubr.f32.mxu0 0.0
        %755 = vmatmul.mubr.f32.gmra.mrb[0].mxu0 %v686
        %v756 = vpop.f32.mrb[0].mxu0
        %v757 = vadd.f32 0.0, %v756
        %v758 = vpop.f32.mrb[0].mxu0
        %759 = vdwg.mxu0
        %s760 = scalar_lea.vmem [#allocation3], 8
        %v761 = vld [vmem:[%s760] sm:$0xff]
        %v762 = vsel %vm498, %v757, -inf
        %763 = vmax.xlane.f32.xlu0 %v762
        %v764 = vpop.xlane.xlu0 %763
        %v765 = vmax.f32 %v761, %v764
        %v766 = vsub.f32 %v761, %v765
        %v767 = vmul.f32 %v766, 1.442695
        %v768 = vpow.pop %v767
        %770 = vset.pattern.permute.xlu0 0
        %771 = vperm.xlu0 %770, %v765
        %v772 = vpop.permute.xlu0 %771
        %v774 = vsub.f32 %v757, %v772
        %v775 = vmul.f32 %v774, 1.442695
        %v776 = vpow.pop %v775
        %s777 = scalar_lea.vmem [#allocation4], 8
        %v778 = vld [vmem:[%s777] sm:$0xff]
        %v779 = vmul.f32 %v768, %v778
        %v780 = vsel %vm498, %v776, 0.0
        %781 = vadd.xlane.f32.xlu0 %v780
        %v782 = vpop.xlane.xlu0 %781
        %v783 = vadd.f32 %v779, %v782
        %784 = vst.msk [vmem:[%s777] sm:$0xff] %vm597, %v783
        %s785 = scalar_lea.vmem [#allocation5], 8
        %v786 = vld [vmem:[%s785] sm:$0xff]
        %788 = vset.pattern.permute.xlu0 0
        %789 = vperm.xlu0 %788, %v768
        %v790 = vpop.permute.xlu0 %789
        %v792 = vmul.f32 %v790, %v786
        %794 = vrot.lane.b32.xlu0 %v496, 120
        %v795 = vpop.permute.xlu0 %794
        %v798 = vsel %vm498, %v776, 0
        %800 = vmatprep.subr.mxu0 0.0
        %801 = vmatpush1.msra.mxu0 %v795
        %802 = vmatprep.subr.mxu0 0.0
        %803 = vmatpush1.msra.mxu0 0.0
        %804 = vmatprep.subr.mxu0 0.0
        %805 = vmatpush1.msra.mxu0 0.0
        %806 = vmatprep.subr.mxu0 0.0
        %807 = vmatpush1.msra.mxu0 0.0
        %808 = vmatprep.subr.mxu0 0.0
        %809 = vmatpush1.msra.mxu0 0.0
        %810 = vmatprep.subr.mxu0 0.0
        %811 = vmatpush1.msra.mxu0 0.0
        %812 = vmatprep.subr.mxu0 0.0
        %813 = vmatpush1.msra.mxu0 0.0
        %814 = vmatprep.subr.mxu0 0.0
        %815 = vmatpush1.msra.mxu0 0.0
        %816 = vmatprep.subr.mxu0 0.0
        %817 = vmatpush1.msra.mxu0 0.0
        %818 = vmatprep.subr.mxu0 0.0
        %819 = vmatpush1.msra.mxu0 0.0
        %820 = vmatprep.subr.mxu0 0.0
        %821 = vmatpush1.msra.mxu0 0.0
        %822 = vmatprep.subr.mxu0 0.0
        %823 = vmatpush1.msra.mxu0 0.0
        %824 = vmatprep.subr.mxu0 0.0
        %825 = vmatpush1.msra.mxu0 0.0
        %826 = vmatprep.subr.mxu0 0.0
        %827 = vmatpush1.msra.mxu0 0.0
        %828 = vmatprep.subr.mxu0 0.0
        %829 = vmatpush1.msra.mxu0 0.0
        %830 = vmatprep.subr.mxu0 0.0
        %831 = vmatpush1.msra.mxu0 0.0
        %832 = vmatprep.subr.mxu0 0.0
        %833 = vmatpush1.msra.mxu0 0.0
        %834 = vmatprep.subr.mxu0 0.0
        %835 = vmatpush1.msra.mxu0 0.0
        %836 = vmatprep.subr.mxu0 0.0
        %837 = vmatpush1.msra.mxu0 0.0
        %838 = vmatprep.subr.mxu0 0.0
        %839 = vmatpush1.msra.mxu0 0.0
        %840 = vmatprep.subr.mxu0 0.0
        %841 = vmatpush1.msra.mxu0 0.0
        %842 = vmatprep.subr.mxu0 0.0
        %843 = vmatpush1.msra.mxu0 0.0
        %844 = vmatprep.subr.mxu0 0.0
        %845 = vmatpush1.msra.mxu0 0.0
        %846 = vmatprep.subr.mxu0 0.0
        %847 = vmatpush1.msra.mxu0 0.0
        %848 = vmatprep.subr.mxu0 0.0
        %849 = vmatpush1.msra.mxu0 0.0
        %850 = vmatprep.subr.mxu0 0.0
        %851 = vmatpush1.msra.mxu0 0.0
        %852 = vmatprep.subr.mxu0 0.0
        %853 = vmatpush1.msra.mxu0 0.0
        %854 = vmatprep.subr.mxu0 0.0
        %855 = vmatpush1.msra.mxu0 0.0
        %856 = vmatprep.subr.mxu0 0.0
        %857 = vmatpush1.msra.mxu0 0.0
        %858 = vmatprep.subr.mxu0 0.0
        %859 = vmatpush1.msra.mxu0 0.0
        %860 = vmatprep.subr.mxu0 0.0
        %861 = vmatpush1.msra.mxu0 0.0
        %862 = vmatprep.subr.mxu0 0.0
        %863 = vmatpush1.msra.mxu0 0.0
        %864 = vmatprep.mubr.f32.mxu0 0.0
        %865 = vmatmul.mubr.f32.gmra.mrb[0].mxu0 %v798
        %v866 = vpop.f32.mrb[0].mxu0
        %v867 = vadd.f32 0.0, %v866
        %v868 = vpop.f32.mrb[0].mxu0
        %869 = vdwg.mxu0
        %v870 = vadd.f32 %v792, %v867
        %871 = vst.msk [vmem:[%s785] sm:$0xff] %vm498, %v870
        %872 = vst.msk [vmem:[%s760] sm:$0xff] %vm597, %v765
        %873 = vrot.lane.b32.xlu0 %v497, 112
        %v874 = vpop.permute.xlu0 %873
        %875 = vrot.lane.b32.xlu0 %v495, 112
        %v876 = vpop.permute.xlu0 %875
        %v877 = vsel %vm498, %v874, 0
        %v879 = vsel %vm498, %v876, 0
        %881 = vmatprep.subr.mxu0 0.0
        %882 = vmatpush1.xpose.msra.mxu0 %v879
        %883 = vmatprep.subr.mxu0 0.0
        %884 = vmatpush1.xpose.msra.mxu0 0.0
        %885 = vmatprep.subr.mxu0 0.0
        %886 = vmatpush1.xpose.msra.mxu0 0.0
        %887 = vmatprep.subr.mxu0 0.0
        %888 = vmatpush1.xpose.msra.mxu0 0.0
        %889 = vmatprep.subr.mxu0 0.0
        %890 = vmatpush1.xpose.msra.mxu0 0.0
        %891 = vmatprep.subr.mxu0 0.0
        %892 = vmatpush1.xpose.msra.mxu0 0.0
        %893 = vmatprep.subr.mxu0 0.0
        %894 = vmatpush1.xpose.msra.mxu0 0.0
        %895 = vmatprep.subr.mxu0 0.0
        %896 = vmatpush1.xpose.msra.mxu0 0.0
        %897 = vmatprep.subr.mxu0 0.0
        %898 = vmatpush1.xpose.msra.mxu0 0.0
        %899 = vmatprep.subr.mxu0 0.0
        %900 = vmatpush1.xpose.msra.mxu0 0.0
        %901 = vmatprep.subr.mxu0 0.0
        %902 = vmatpush1.xpose.msra.mxu0 0.0
        %903 = vmatprep.subr.mxu0 0.0
        %904 = vmatpush1.xpose.msra.mxu0 0.0
        %905 = vmatprep.subr.mxu0 0.0
        %906 = vmatpush1.xpose.msra.mxu0 0.0
        %907 = vmatprep.subr.mxu0 0.0
        %908 = vmatpush1.xpose.msra.mxu0 0.0
        %909 = vmatprep.subr.mxu0 0.0
        %910 = vmatpush1.xpose.msra.mxu0 0.0
        %911 = vmatprep.subr.mxu0 0.0
        %912 = vmatpush1.xpose.msra.mxu0 0.0
        %913 = vmatprep.subr.mxu0 0.0
        %914 = vmatpush1.xpose.msra.mxu0 0.0
        %915 = vmatprep.subr.mxu0 0.0
        %916 = vmatpush1.xpose.msra.mxu0 0.0
        %917 = vmatprep.subr.mxu0 0.0
        %918 = vmatpush1.xpose.msra.mxu0 0.0
        %919 = vmatprep.subr.mxu0 0.0
        %920 = vmatpush1.xpose.msra.mxu0 0.0
        %921 = vmatprep.subr.mxu0 0.0
        %922 = vmatpush1.xpose.msra.mxu0 0.0
        %923 = vmatprep.subr.mxu0 0.0
        %924 = vmatpush1.xpose.msra.mxu0 0.0
        %925 = vmatprep.subr.mxu0 0.0
        %926 = vmatpush1.xpose.msra.mxu0 0.0
        %927 = vmatprep.subr.mxu0 0.0
        %928 = vmatpush1.xpose.msra.mxu0 0.0
        %929 = vmatprep.subr.mxu0 0.0
        %930 = vmatpush1.xpose.msra.mxu0 0.0
        %931 = vmatprep.subr.mxu0 0.0
        %932 = vmatpush1.xpose.msra.mxu0 0.0
        %933 = vmatprep.subr.mxu0 0.0
        %934 = vmatpush1.xpose.msra.mxu0 0.0
        %935 = vmatprep.subr.mxu0 0.0
        %936 = vmatpush1.xpose.msra.mxu0 0.0
        %937 = vmatprep.subr.mxu0 0.0
        %938 = vmatpush1.xpose.msra.mxu0 0.0
        %939 = vmatprep.subr.mxu0 0.0
        %940 = vmatpush1.xpose.msra.mxu0 0.0
        %941 = vmatprep.subr.mxu0 0.0
        %942 = vmatpush1.xpose.msra.mxu0 0.0
        %943 = vmatprep.subr.mxu0 0.0
        %944 = vmatpush1.xpose.msra.mxu0 0.0
        %945 = vmatprep.mubr.f32.mxu0 0.0
        %946 = vmatmul.mubr.f32.gmra.mrb[0].mxu0 %v877
        %v947 = vpop.f32.mrb[0].mxu0
        %v948 = vadd.f32 0.0, %v947
        %v949 = vpop.f32.mrb[0].mxu0
        %950 = vdwg.mxu0
        %s951 = scalar_lea.vmem [#allocation3], 16
        %v952 = vld [vmem:[%s951] sm:$0xff]
        %v953 = vsel %vm498, %v948, -inf
        %954 = vmax.xlane.f32.xlu0 %v953
        %v955 = vpop.xlane.xlu0 %954
        %v956 = vmax.f32 %v952, %v955
        %v957 = vsub.f32 %v952, %v956
        %v958 = vmul.f32 %v957, 1.442695
        %v959 = vpow.pop %v958
        %961 = vset.pattern.permute.xlu0 0
        %962 = vperm.xlu0 %961, %v956
        %v963 = vpop.permute.xlu0 %962
        %v965 = vsub.f32 %v948, %v963
        %v966 = vmul.f32 %v965, 1.442695
        %v967 = vpow.pop %v966
        %s968 = scalar_lea.vmem [#allocation4], 16
        %v969 = vld [vmem:[%s968] sm:$0xff]
        %v970 = vmul.f32 %v959, %v969
        %v971 = vsel %vm498, %v967, 0.0
        %972 = vadd.xlane.f32.xlu0 %v971
        %v973 = vpop.xlane.xlu0 %972
        %v974 = vadd.f32 %v970, %v973
        %975 = vst.msk [vmem:[%s968] sm:$0xff] %vm597, %v974
        %s976 = scalar_lea.vmem [#allocation5], 16
        %v977 = vld [vmem:[%s976] sm:$0xff]
        %979 = vset.pattern.permute.xlu0 0
        %980 = vperm.xlu0 %979, %v959
        %v981 = vpop.permute.xlu0 %980
        %v983 = vmul.f32 %v981, %v977
        %984 = vrot.lane.b32.xlu0 %v496, 112
        %v985 = vpop.permute.xlu0 %984
        %v988 = vsel %vm498, %v967, 0
        %990 = vmatprep.subr.mxu0 0.0
        %991 = vmatpush1.msra.mxu0 %v985
        %992 = vmatprep.subr.mxu0 0.0
        %993 = vmatpush1.msra.mxu0 0.0
        %994 = vmatprep.subr.mxu0 0.0
        %995 = vmatpush1.msra.mxu0 0.0
        %996 = vmatprep.subr.mxu0 0.0
        %997 = vmatpush1.msra.mxu0 0.0
        %998 = vmatprep.subr.mxu0 0.0
        %999 = vmatpush1.msra.mxu0 0.0
        %1000 = vmatprep.subr.mxu0 0.0
        %1001 = vmatpush1.msra.mxu0 0.0
        %1002 = vmatprep.subr.mxu0 0.0
        %1003 = vmatpush1.msra.mxu0 0.0
        %1004 = vmatprep.subr.mxu0 0.0
        %1005 = vmatpush1.msra.mxu0 0.0
        %1006 = vmatprep.subr.mxu0 0.0
        %1007 = vmatpush1.msra.mxu0 0.0
        %1008 = vmatprep.subr.mxu0 0.0
        %1009 = vmatpush1.msra.mxu0 0.0
        %1010 = vmatprep.subr.mxu0 0.0
        %1011 = vmatpush1.msra.mxu0 0.0
        %1012 = vmatprep.subr.mxu0 0.0
        %1013 = vmatpush1.msra.mxu0 0.0
        %1014 = vmatprep.subr.mxu0 0.0
        %1015 = vmatpush1.msra.mxu0 0.0
        %1016 = vmatprep.subr.mxu0 0.0
        %1017 = vmatpush1.msra.mxu0 0.0
        %1018 = vmatprep.subr.mxu0 0.0
        %1019 = vmatpush1.msra.mxu0 0.0
        %1020 = vmatprep.subr.mxu0 0.0
        %1021 = vmatpush1.msra.mxu0 0.0
        %1022 = vmatprep.subr.mxu0 0.0
        %1023 = vmatpush1.msra.mxu0 0.0
        %1024 = vmatprep.subr.mxu0 0.0
        %1025 = vmatpush1.msra.mxu0 0.0
        %1026 = vmatprep.subr.mxu0 0.0
        %1027 = vmatpush1.msra.mxu0 0.0
        %1028 = vmatprep.subr.mxu0 0.0
        %1029 = vmatpush1.msra.mxu0 0.0
        %1030 = vmatprep.subr.mxu0 0.0
        %1031 = vmatpush1.msra.mxu0 0.0
        %1032 = vmatprep.subr.mxu0 0.0
        %1033 = vmatpush1.msra.mxu0 0.0
        %1034 = vmatprep.subr.mxu0 0.0
        %1035 = vmatpush1.msra.mxu0 0.0
        %1036 = vmatprep.subr.mxu0 0.0
        %1037 = vmatpush1.msra.mxu0 0.0
        %1038 = vmatprep.subr.mxu0 0.0
        %1039 = vmatpush1.msra.mxu0 0.0
        %1040 = vmatprep.subr.mxu0 0.0
        %1041 = vmatpush1.msra.mxu0 0.0
        %1042 = vmatprep.subr.mxu0 0.0
        %1043 = vmatpush1.msra.mxu0 0.0
        %1044 = vmatprep.subr.mxu0 0.0
        %1045 = vmatpush1.msra.mxu0 0.0
        %1046 = vmatprep.subr.mxu0 0.0
        %1047 = vmatpush1.msra.mxu0 0.0
        %1048 = vmatprep.subr.mxu0 0.0
        %1049 = vmatpush1.msra.mxu0 0.0
        %1050 = vmatprep.subr.mxu0 0.0
        %1051 = vmatpush1.msra.mxu0 0.0
        %1052 = vmatprep.subr.mxu0 0.0
        %1053 = vmatpush1.msra.mxu0 0.0
        %1054 = vmatprep.mubr.f32.mxu0 0.0
        %1055 = vmatmul.mubr.f32.gmra.mrb[0].mxu0 %v988
        %v1056 = vpop.f32.mrb[0].mxu0
        %v1057 = vadd.f32 0.0, %v1056
        %v1058 = vpop.f32.mrb[0].mxu0
        %1059 = vdwg.mxu0
        %v1060 = vadd.f32 %v983, %v1057
        %1061 = vst.msk [vmem:[%s976] sm:$0xff] %vm498, %v1060
        %1062 = vst.msk [vmem:[%s951] sm:$0xff] %vm597, %v956
        %1063 = vrot.lane.b32.xlu0 %v497, 104
        %v1064 = vpop.permute.xlu0 %1063
        %1065 = vrot.lane.b32.xlu0 %v495, 104
        %v1066 = vpop.permute.xlu0 %1065
        %v1067 = vsel %vm498, %v1064, 0
        %v1069 = vsel %vm498, %v1066, 0
        %1071 = vmatprep.subr.mxu0 0.0
        %1072 = vmatpush1.xpose.msra.mxu0 %v1069
        %1073 = vmatprep.subr.mxu0 0.0
        %1074 = vmatpush1.xpose.msra.mxu0 0.0
        %1075 = vmatprep.subr.mxu0 0.0
        %1076 = vmatpush1.xpose.msra.mxu0 0.0
        %1077 = vmatprep.subr.mxu0 0.0
        %1078 = vmatpush1.xpose.msra.mxu0 0.0
        %1079 = vmatprep.subr.mxu0 0.0
        %1080 = vmatpush1.xpose.msra.mxu0 0.0
        %1081 = vmatprep.subr.mxu0 0.0
        %1082 = vmatpush1.xpose.msra.mxu0 0.0
        %1083 = vmatprep.subr.mxu0 0.0
        %1084 = vmatpush1.xpose.msra.mxu0 0.0
        %1085 = vmatprep.subr.mxu0 0.0
        %1086 = vmatpush1.xpose.msra.mxu0 0.0
        %1087 = vmatprep.subr.mxu0 0.0
        %1088 = vmatpush1.xpose.msra.mxu0 0.0
        %1089 = vmatprep.subr.mxu0 0.0
        %1090 = vmatpush1.xpose.msra.mxu0 0.0
        %1091 = vmatprep.subr.mxu0 0.0
        %1092 = vmatpush1.xpose.msra.mxu0 0.0
        %1093 = vmatprep.subr.mxu0 0.0
        %1094 = vmatpush1.xpose.msra.mxu0 0.0
        %1095 = vmatprep.subr.mxu0 0.0
        %1096 = vmatpush1.xpose.msra.mxu0 0.0
        %1097 = vmatprep.subr.mxu0 0.0
        %1098 = vmatpush1.xpose.msra.mxu0 0.0
        %1099 = vmatprep.subr.mxu0 0.0
        %1100 = vmatpush1.xpose.msra.mxu0 0.0
        %1101 = vmatprep.subr.mxu0 0.0
        %1102 = vmatpush1.xpose.msra.mxu0 0.0
        %1103 = vmatprep.subr.mxu0 0.0
        %1104 = vmatpush1.xpose.msra.mxu0 0.0
        %1105 = vmatprep.subr.mxu0 0.0
        %1106 = vmatpush1.xpose.msra.mxu0 0.0
        %1107 = vmatprep.subr.mxu0 0.0
        %1108 = vmatpush1.xpose.msra.mxu0 0.0
        %1109 = vmatprep.subr.mxu0 0.0
        %1110 = vmatpush1.xpose.msra.mxu0 0.0
        %1111 = vmatprep.subr.mxu0 0.0
        %1112 = vmatpush1.xpose.msra.mxu0 0.0
        %1113 = vmatprep.subr.mxu0 0.0
        %1114 = vmatpush1.xpose.msra.mxu0 0.0
        %1115 = vmatprep.subr.mxu0 0.0
        %1116 = vmatpush1.xpose.msra.mxu0 0.0
        %1117 = vmatprep.subr.mxu0 0.0
        %1118 = vmatpush1.xpose.msra.mxu0 0.0
        %1119 = vmatprep.subr.mxu0 0.0
        %1120 = vmatpush1.xpose.msra.mxu0 0.0
        %1121 = vmatprep.subr.mxu0 0.0
        %1122 = vmatpush1.xpose.msra.mxu0 0.0
        %1123 = vmatprep.subr.mxu0 0.0
        %1124 = vmatpush1.xpose.msra.mxu0 0.0
        %1125 = vmatprep.subr.mxu0 0.0
        %1126 = vmatpush1.xpose.msra.mxu0 0.0
        %1127 = vmatprep.subr.mxu0 0.0
        %1128 = vmatpush1.xpose.msra.mxu0 0.0
        %1129 = vmatprep.subr.mxu0 0.0
        %1130 = vmatpush1.xpose.msra.mxu0 0.0
        %1131 = vmatprep.subr.mxu0 0.0
        %1132 = vmatpush1.xpose.msra.mxu0 0.0
        %1133 = vmatprep.subr.mxu0 0.0
        %1134 = vmatpush1.xpose.msra.mxu0 0.0
        %1135 = vmatprep.mubr.f32.mxu0 0.0
        %1136 = vmatmul.mubr.f32.gmra.mrb[0].mxu0 %v1067
        %v1137 = vpop.f32.mrb[0].mxu0
        %v1138 = vadd.f32 0.0, %v1137
        %v1139 = vpop.f32.mrb[0].mxu0
        %1140 = vdwg.mxu0
        %s1141 = scalar_lea.vmem [#allocation3], 24
        %v1142 = vld [vmem:[%s1141] sm:$0xff]
        %v1143 = vsel %vm498, %v1138, -inf
        %1144 = vmax.xlane.f32.xlu0 %v1143
        %v1145 = vpop.xlane.xlu0 %1144
        %v1146 = vmax.f32 %v1142, %v1145
        %v1147 = vsub.f32 %v1142, %v1146
        %v1148 = vmul.f32 %v1147, 1.442695
        %v1149 = vpow.pop %v1148
        %1151 = vset.pattern.permute.xlu0 0
        %1152 = vperm.xlu0 %1151, %v1146
        %v1153 = vpop.permute.xlu0 %1152
        %v1155 = vsub.f32 %v1138, %v1153
        %v1156 = vmul.f32 %v1155, 1.442695
        %v1157 = vpow.pop %v1156
        %s1158 = scalar_lea.vmem [#allocation4], 24
        %v1159 = vld [vmem:[%s1158] sm:$0xff]
        %v1160 = vmul.f32 %v1149, %v1159
        %v1161 = vsel %vm498, %v1157, 0.0
        %1162 = vadd.xlane.f32.xlu0 %v1161
        %v1163 = vpop.xlane.xlu0 %1162
        %v1164 = vadd.f32 %v1160, %v1163
        %1165 = vst.msk [vmem:[%s1158] sm:$0xff] %vm597, %v1164
        %s1166 = scalar_lea.vmem [#allocation5], 24
        %v1167 = vld [vmem:[%s1166] sm:$0xff]
        %1169 = vset.pattern.permute.xlu0 0
        %1170 = vperm.xlu0 %1169, %v1149
        %v1171 = vpop.permute.xlu0 %1170
        %v1173 = vmul.f32 %v1171, %v1167
        %1174 = vrot.lane.b32.xlu0 %v496, 104
        %v1175 = vpop.permute.xlu0 %1174
        %v1178 = vsel %vm498, %v1157, 0
        %1180 = vmatprep.subr.mxu0 0.0
        %1181 = vmatpush1.msra.mxu0 %v1175
        %1182 = vmatprep.subr.mxu0 0.0
        %1183 = vmatpush1.msra.mxu0 0.0
        %1184 = vmatprep.subr.mxu0 0.0
        %1185 = vmatpush1.msra.mxu0 0.0
        %1186 = vmatprep.subr.mxu0 0.0
        %1187 = vmatpush1.msra.mxu0 0.0
        %1188 = vmatprep.subr.mxu0 0.0
        %1189 = vmatpush1.msra.mxu0 0.0
        %1190 = vmatprep.subr.mxu0 0.0
        %1191 = vmatpush1.msra.mxu0 0.0
        %1192 = vmatprep.subr.mxu0 0.0
        %1193 = vmatpush1.msra.mxu0 0.0
        %1194 = vmatprep.subr.mxu0 0.0
        %1195 = vmatpush1.msra.mxu0 0.0
        %1196 = vmatprep.subr.mxu0 0.0
        %1197 = vmatpush1.msra.mxu0 0.0
        %1198 = vmatprep.subr.mxu0 0.0
        %1199 = vmatpush1.msra.mxu0 0.0
        %1200 = vmatprep.subr.mxu0 0.0
        %1201 = vmatpush1.msra.mxu0 0.0
        %1202 = vmatprep.subr.mxu0 0.0
        %1203 = vmatpush1.msra.mxu0 0.0
        %1204 = vmatprep.subr.mxu0 0.0
        %1205 = vmatpush1.msra.mxu0 0.0
        %1206 = vmatprep.subr.mxu0 0.0
        %1207 = vmatpush1.msra.mxu0 0.0
        %1208 = vmatprep.subr.mxu0 0.0
        %1209 = vmatpush1.msra.mxu0 0.0
        %1210 = vmatprep.subr.mxu0 0.0
        %1211 = vmatpush1.msra.mxu0 0.0
        %1212 = vmatprep.subr.mxu0 0.0
        %1213 = vmatpush1.msra.mxu0 0.0
        %1214 = vmatprep.subr.mxu0 0.0
        %1215 = vmatpush1.msra.mxu0 0.0
        %1216 = vmatprep.subr.mxu0 0.0
        %1217 = vmatpush1.msra.mxu0 0.0
        %1218 = vmatprep.subr.mxu0 0.0
        %1219 = vmatpush1.msra.mxu0 0.0
        %1220 = vmatprep.subr.mxu0 0.0
        %1221 = vmatpush1.msra.mxu0 0.0
        %1222 = vmatprep.subr.mxu0 0.0
        %1223 = vmatpush1.msra.mxu0 0.0
        %1224 = vmatprep.subr.mxu0 0.0
        %1225 = vmatpush1.msra.mxu0 0.0
        %1226 = vmatprep.subr.mxu0 0.0
        %1227 = vmatpush1.msra.mxu0 0.0
        %1228 = vmatprep.subr.mxu0 0.0
        %1229 = vmatpush1.msra.mxu0 0.0
        %1230 = vmatprep.subr.mxu0 0.0
        %1231 = vmatpush1.msra.mxu0 0.0
        %1232 = vmatprep.subr.mxu0 0.0
        %1233 = vmatpush1.msra.mxu0 0.0
        %1234 = vmatprep.subr.mxu0 0.0
        %1235 = vmatpush1.msra.mxu0 0.0
        %1236 = vmatprep.subr.mxu0 0.0
        %1237 = vmatpush1.msra.mxu0 0.0
        %1238 = vmatprep.subr.mxu0 0.0
        %1239 = vmatpush1.msra.mxu0 0.0
        %1240 = vmatprep.subr.mxu0 0.0
        %1241 = vmatpush1.msra.mxu0 0.0
        %1242 = vmatprep.subr.mxu0 0.0
        %1243 = vmatpush1.msra.mxu0 0.0
        %1244 = vmatprep.mubr.f32.mxu0 0.0
        %1245 = vmatmul.mubr.f32.gmra.mrb[0].mxu0 %v1178
        %v1246 = vpop.f32.mrb[0].mxu0
        %v1247 = vadd.f32 0.0, %v1246
        %v1248 = vpop.f32.mrb[0].mxu0
        %1249 = vdwg.mxu0
        %v1250 = vadd.f32 %v1173, %v1247
        %1251 = vst.msk [vmem:[%s1166] sm:$0xff] %vm498, %v1250
        %1252 = vst.msk [vmem:[%s1141] sm:$0xff] %vm597, %v1146
        // Predicated region
        $region69: #{tpu_custom_call.1} parent=43 // pred_check
          %p1253 = pneg %p397
        $region70: #{tpu_custom_call.1} parent=43 // pred_check_branch
          %1255 = sbr.rel (%p1253) target = $region72
        $region71: #{tpu_custom_call.1} parent=43 // pred_region
          %v1256 = vld [vmem:[#allocation5] sm:$0xff]
          %v1257 = vld [vmem:[#allocation4] sm:$0xff]
          %1259 = vset.pattern.permute.xlu0 0
          %1260 = vperm.xlu0 %1259, %v1257
          %v1261 = vpop.permute.xlu0 %1260
          %v1263 = vrcp.pop %v1261
          %v1264 = vmul.f32 %v1256, %v1263
          %v1265 = vld [vmem:[#allocation14] sm:$0xff]
          %v1266 = vld [vmem:[%s785] sm:$0xff]
          %v1267 = vld [vmem:[%s777] sm:$0xff]
          %1269 = vset.pattern.permute.xlu0 0
          %1270 = vperm.xlu0 %1269, %v1267
          %v1271 = vpop.permute.xlu0 %1270
          %v1273 = vrcp.pop %v1271
          %v1274 = vmul.f32 %v1266, %v1273
          %v1275 = vld [vmem:[#allocation14 + $0x8] sm:$0xff]
          %v1277 = vsel %vm498, %v1274, 0
          %1279 = vmatprep.subr.mxu0 0.0
          %1280 = vmatpush1.msra.mxu0 %v1275
          %1281 = vmatprep.subr.mxu0 0.0
          %1282 = vmatpush1.msra.mxu0 0.0
          %1283 = vmatprep.subr.mxu0 0.0
          %1284 = vmatpush1.msra.mxu0 0.0
          %1285 = vmatprep.subr.mxu0 0.0
          %1286 = vmatpush1.msra.mxu0 0.0
          %1287 = vmatprep.subr.mxu0 0.0
          %1288 = vmatpush1.msra.mxu0 0.0
          %1289 = vmatprep.subr.mxu0 0.0
          %1290 = vmatpush1.msra.mxu0 0.0
          %1291 = vmatprep.subr.mxu0 0.0
          %1292 = vmatpush1.msra.mxu0 0.0
          %1293 = vmatprep.subr.mxu0 0.0
          %1294 = vmatpush1.msra.mxu0 0.0
          %1295 = vmatprep.subr.mxu0 0.0
          %1296 = vmatpush1.msra.mxu0 0.0
          %1297 = vmatprep.subr.mxu0 0.0
          %1298 = vmatpush1.msra.mxu0 0.0
          %1299 = vmatprep.subr.mxu0 0.0
          %1300 = vmatpush1.msra.mxu0 0.0
          %1301 = vmatprep.subr.mxu0 0.0
          %1302 = vmatpush1.msra.mxu0 0.0
          %1303 = vmatprep.subr.mxu0 0.0
          %1304 = vmatpush1.msra.mxu0 0.0
          %1305 = vmatprep.subr.mxu0 0.0
          %1306 = vmatpush1.msra.mxu0 0.0
          %1307 = vmatprep.subr.mxu0 0.0
          %1308 = vmatpush1.msra.mxu0 0.0
          %1309 = vmatprep.subr.mxu0 0.0
          %1310 = vmatpush1.msra.mxu0 0.0
          %1311 = vmatprep.subr.mxu0 0.0
          %1312 = vmatpush1.msra.mxu0 0.0
          %1313 = vmatprep.subr.mxu0 0.0
          %1314 = vmatpush1.msra.mxu0 0.0
          %1315 = vmatprep.subr.mxu0 0.0
          %1316 = vmatpush1.msra.mxu0 0.0
          %1317 = vmatprep.subr.mxu0 0.0
          %1318 = vmatpush1.msra.mxu0 0.0
          %1319 = vmatprep.subr.mxu0 0.0
          %1320 = vmatpush1.msra.mxu0 0.0
          %1321 = vmatprep.subr.mxu0 0.0
          %1322 = vmatpush1.msra.mxu0 0.0
          %1323 = vmatprep.subr.mxu0 0.0
          %1324 = vmatpush1.msra.mxu0 0.0
          %1325 = vmatprep.subr.mxu0 0.0
          %1326 = vmatpush1.msra.mxu0 0.0
          %1327 = vmatprep.subr.mxu0 0.0
          %1328 = vmatpush1.msra.mxu0 0.0
          %1329 = vmatprep.subr.mxu0 0.0
          %1330 = vmatpush1.msra.mxu0 0.0
          %1331 = vmatprep.subr.mxu0 0.0
          %1332 = vmatpush1.msra.mxu0 0.0
          %1333 = vmatprep.subr.mxu0 0.0
          %1334 = vmatpush1.msra.mxu0 0.0
          %1335 = vmatprep.subr.mxu0 0.0
          %1336 = vmatpush1.msra.mxu0 0.0
          %1337 = vmatprep.subr.mxu0 0.0
          %1338 = vmatpush1.msra.mxu0 0.0
          %1339 = vmatprep.subr.mxu0 0.0
          %1340 = vmatpush1.msra.mxu0 0.0
          %1341 = vmatprep.subr.mxu0 0.0
          %1342 = vmatpush1.msra.mxu0 0.0
          %1343 = vmatprep.mubr.f32.mxu0 0.0
          %1344 = vmatmul.mubr.f32.gmra.mrb[0].mxu0 %v1277
          %v1345 = vpop.f32.mrb[0].mxu0
          %v1346 = vadd.f32 0.0, %v1345
          %v1347 = vpop.f32.mrb[0].mxu0
          %1348 = vdwg.mxu0
          %v1350 = vsel %vm498, %v1264, 0
          %1352 = vmatprep.subr.mxu0 0.0
          %1353 = vmatpush1.msra.mxu0 %v1265
          %1354 = vmatprep.subr.mxu0 0.0
          %1355 = vmatpush1.msra.mxu0 0.0
          %1356 = vmatprep.subr.mxu0 0.0
          %1357 = vmatpush1.msra.mxu0 0.0
          %1358 = vmatprep.subr.mxu0 0.0
          %1359 = vmatpush1.msra.mxu0 0.0
          %1360 = vmatprep.subr.mxu0 0.0
          %1361 = vmatpush1.msra.mxu0 0.0
          %1362 = vmatprep.subr.mxu0 0.0
          %1363 = vmatpush1.msra.mxu0 0.0
          %1364 = vmatprep.subr.mxu0 0.0
          %1365 = vmatpush1.msra.mxu0 0.0
          %1366 = vmatprep.subr.mxu0 0.0
          %1367 = vmatpush1.msra.mxu0 0.0
          %1368 = vmatprep.subr.mxu0 0.0
          %1369 = vmatpush1.msra.mxu0 0.0
          %1370 = vmatprep.subr.mxu0 0.0
          %1371 = vmatpush1.msra.mxu0 0.0
          %1372 = vmatprep.subr.mxu0 0.0
          %1373 = vmatpush1.msra.mxu0 0.0
          %1374 = vmatprep.subr.mxu0 0.0
          %1375 = vmatpush1.msra.mxu0 0.0
          %1376 = vmatprep.subr.mxu0 0.0
          %1377 = vmatpush1.msra.mxu0 0.0
          %1378 = vmatprep.subr.mxu0 0.0
          %1379 = vmatpush1.msra.mxu0 0.0
          %1380 = vmatprep.subr.mxu0 0.0
          %1381 = vmatpush1.msra.mxu0 0.0
          %1382 = vmatprep.subr.mxu0 0.0
          %1383 = vmatpush1.msra.mxu0 0.0
          %1384 = vmatprep.subr.mxu0 0.0
          %1385 = vmatpush1.msra.mxu0 0.0
          %1386 = vmatprep.subr.mxu0 0.0
          %1387 = vmatpush1.msra.mxu0 0.0
          %1388 = vmatprep.subr.mxu0 0.0
          %1389 = vmatpush1.msra.mxu0 0.0
          %1390 = vmatprep.subr.mxu0 0.0
          %1391 = vmatpush1.msra.mxu0 0.0
          %1392 = vmatprep.subr.mxu0 0.0
          %1393 = vmatpush1.msra.mxu0 0.0
          %1394 = vmatprep.subr.mxu0 0.0
          %1395 = vmatpush1.msra.mxu0 0.0
          %1396 = vmatprep.subr.mxu0 0.0
          %1397 = vmatpush1.msra.mxu0 0.0
          %1398 = vmatprep.subr.mxu0 0.0
          %1399 = vmatpush1.msra.mxu0 0.0
          %1400 = vmatprep.subr.mxu0 0.0
          %1401 = vmatpush1.msra.mxu0 0.0
          %1402 = vmatprep.subr.mxu0 0.0
          %1403 = vmatpush1.msra.mxu0 0.0
          %1404 = vmatprep.subr.mxu0 0.0
          %1405 = vmatpush1.msra.mxu0 0.0
          %1406 = vmatprep.subr.mxu0 0.0
          %1407 = vmatpush1.msra.mxu0 0.0
          %1408 = vmatprep.subr.mxu0 0.0
          %1409 = vmatpush1.msra.mxu0 0.0
          %1410 = vmatprep.subr.mxu0 0.0
          %1411 = vmatpush1.msra.mxu0 0.0
          %1412 = vmatprep.subr.mxu0 0.0
          %1413 = vmatpush1.msra.mxu0 0.0
          %1414 = vmatprep.subr.mxu0 0.0
          %1415 = vmatpush1.msra.mxu0 0.0
          %1416 = vmatprep.mubr.f32.mxu0 0.0
          %1417 = vmatmul.mubr.f32.gmra.mrb[0].mxu0 %v1350
          %v1418 = vpop.f32.mrb[0].mxu0
          %v1419 = vadd.f32 %v1346, %v1418
          %v1420 = vpop.f32.mrb[0].mxu0
          %1421 = vdwg.mxu0
          %v1422 = vld [vmem:[%s976] sm:$0xff]
          %v1423 = vld [vmem:[%s968] sm:$0xff]
          %1425 = vset.pattern.permute.xlu0 0
          %1426 = vperm.xlu0 %1425, %v1423
          %v1427 = vpop.permute.xlu0 %1426
          %v1429 = vrcp.pop %v1427
          %v1430 = vmul.f32 %v1422, %v1429
          %v1431 = vld [vmem:[#allocation14 + $0x10] sm:$0xff]
          %v1433 = vsel %vm498, %v1430, 0
          %1435 = vmatprep.subr.mxu0 0.0
          %1436 = vmatpush1.msra.mxu0 %v1431
          %1437 = vmatprep.subr.mxu0 0.0
          %1438 = vmatpush1.msra.mxu0 0.0
          %1439 = vmatprep.subr.mxu0 0.0
          %1440 = vmatpush1.msra.mxu0 0.0
          %1441 = vmatprep.subr.mxu0 0.0
          %1442 = vmatpush1.msra.mxu0 0.0
          %1443 = vmatprep.subr.mxu0 0.0
          %1444 = vmatpush1.msra.mxu0 0.0
          %1445 = vmatprep.subr.mxu0 0.0
          %1446 = vmatpush1.msra.mxu0 0.0
          %1447 = vmatprep.subr.mxu0 0.0
          %1448 = vmatpush1.msra.mxu0 0.0
          %1449 = vmatprep.subr.mxu0 0.0
          %1450 = vmatpush1.msra.mxu0 0.0
          %1451 = vmatprep.subr.mxu0 0.0
          %1452 = vmatpush1.msra.mxu0 0.0
          %1453 = vmatprep.subr.mxu0 0.0
          %1454 = vmatpush1.msra.mxu0 0.0
          %1455 = vmatprep.subr.mxu0 0.0
          %1456 = vmatpush1.msra.mxu0 0.0
          %1457 = vmatprep.subr.mxu0 0.0
          %1458 = vmatpush1.msra.mxu0 0.0
          %1459 = vmatprep.subr.mxu0 0.0
          %1460 = vmatpush1.msra.mxu0 0.0
          %1461 = vmatprep.subr.mxu0 0.0
          %1462 = vmatpush1.msra.mxu0 0.0
          %1463 = vmatprep.subr.mxu0 0.0
          %1464 = vmatpush1.msra.mxu0 0.0
          %1465 = vmatprep.subr.mxu0 0.0
          %1466 = vmatpush1.msra.mxu0 0.0
          %1467 = vmatprep.subr.mxu0 0.0
          %1468 = vmatpush1.msra.mxu0 0.0
          %1469 = vmatprep.subr.mxu0 0.0
          %1470 = vmatpush1.msra.mxu0 0.0
          %1471 = vmatprep.subr.mxu0 0.0
          %1472 = vmatpush1.msra.mxu0 0.0
          %1473 = vmatprep.subr.mxu0 0.0
          %1474 = vmatpush1.msra.mxu0 0.0
          %1475 = vmatprep.subr.mxu0 0.0
          %1476 = vmatpush1.msra.mxu0 0.0
          %1477 = vmatprep.subr.mxu0 0.0
          %1478 = vmatpush1.msra.mxu0 0.0
          %1479 = vmatprep.subr.mxu0 0.0
          %1480 = vmatpush1.msra.mxu0 0.0
          %1481 = vmatprep.subr.mxu0 0.0
          %1482 = vmatpush1.msra.mxu0 0.0
          %1483 = vmatprep.subr.mxu0 0.0
          %1484 = vmatpush1.msra.mxu0 0.0
          %1485 = vmatprep.subr.mxu0 0.0
          %1486 = vmatpush1.msra.mxu0 0.0
          %1487 = vmatprep.subr.mxu0 0.0
          %1488 = vmatpush1.msra.mxu0 0.0
          %1489 = vmatprep.subr.mxu0 0.0
          %1490 = vmatpush1.msra.mxu0 0.0
          %1491 = vmatprep.subr.mxu0 0.0
          %1492 = vmatpush1.msra.mxu0 0.0
          %1493 = vmatprep.subr.mxu0 0.0
          %1494 = vmatpush1.msra.mxu0 0.0
          %1495 = vmatprep.subr.mxu0 0.0
          %1496 = vmatpush1.msra.mxu0 0.0
          %1497 = vmatprep.subr.mxu0 0.0
          %1498 = vmatpush1.msra.mxu0 0.0
          %1499 = vmatprep.mubr.f32.mxu0 0.0
          %1500 = vmatmul.mubr.f32.gmra.mrb[0].mxu0 %v1433
          %v1501 = vpop.f32.mrb[0].mxu0
          %v1502 = vadd.f32 0.0, %v1501
          %v1503 = vpop.f32.mrb[0].mxu0
          %1504 = vdwg.mxu0
          %v1505 = vadd.f32 %v1419, %v1502
          %v1506 = vld [vmem:[%s1166] sm:$0xff]
          %v1507 = vld [vmem:[%s1158] sm:$0xff]
          %1509 = vset.pattern.permute.xlu0 0
          %1510 = vperm.xlu0 %1509, %v1507
          %v1511 = vpop.permute.xlu0 %1510
          %v1513 = vrcp.pop %v1511
          %v1514 = vmul.f32 %v1506, %v1513
          %v1515 = vld [vmem:[#allocation14 + $0x18] sm:$0xff]
          %v1517 = vsel %vm498, %v1514, 0
          %1519 = vmatprep.subr.mxu0 0.0
          %1520 = vmatpush1.msra.mxu0 %v1515
          %1521 = vmatprep.subr.mxu0 0.0
          %1522 = vmatpush1.msra.mxu0 0.0
          %1523 = vmatprep.subr.mxu0 0.0
          %1524 = vmatpush1.msra.mxu0 0.0
          %1525 = vmatprep.subr.mxu0 0.0
          %1526 = vmatpush1.msra.mxu0 0.0
          %1527 = vmatprep.subr.mxu0 0.0
          %1528 = vmatpush1.msra.mxu0 0.0
          %1529 = vmatprep.subr.mxu0 0.0
          %1530 = vmatpush1.msra.mxu0 0.0
          %1531 = vmatprep.subr.mxu0 0.0
          %1532 = vmatpush1.msra.mxu0 0.0
          %1533 = vmatprep.subr.mxu0 0.0
          %1534 = vmatpush1.msra.mxu0 0.0
          %1535 = vmatprep.subr.mxu0 0.0
          %1536 = vmatpush1.msra.mxu0 0.0
          %1537 = vmatprep.subr.mxu0 0.0
          %1538 = vmatpush1.msra.mxu0 0.0
          %1539 = vmatprep.subr.mxu0 0.0
          %1540 = vmatpush1.msra.mxu0 0.0
          %1541 = vmatprep.subr.mxu0 0.0
          %1542 = vmatpush1.msra.mxu0 0.0
          %1543 = vmatprep.subr.mxu0 0.0
          %1544 = vmatpush1.msra.mxu0 0.0
          %1545 = vmatprep.subr.mxu0 0.0
          %1546 = vmatpush1.msra.mxu0 0.0
          %1547 = vmatprep.subr.mxu0 0.0
          %1548 = vmatpush1.msra.mxu0 0.0
          %1549 = vmatprep.subr.mxu0 0.0
          %1550 = vmatpush1.msra.mxu0 0.0
          %1551 = vmatprep.subr.mxu0 0.0
          %1552 = vmatpush1.msra.mxu0 0.0
          %1553 = vmatprep.subr.mxu0 0.0
          %1554 = vmatpush1.msra.mxu0 0.0
          %1555 = vmatprep.subr.mxu0 0.0
          %1556 = vmatpush1.msra.mxu0 0.0
          %1557 = vmatprep.subr.mxu0 0.0
          %1558 = vmatpush1.msra.mxu0 0.0
          %1559 = vmatprep.subr.mxu0 0.0
          %1560 = vmatpush1.msra.mxu0 0.0
          %1561 = vmatprep.subr.mxu0 0.0
          %1562 = vmatpush1.msra.mxu0 0.0
          %1563 = vmatprep.subr.mxu0 0.0
          %1564 = vmatpush1.msra.mxu0 0.0
          %1565 = vmatprep.subr.mxu0 0.0
          %1566 = vmatpush1.msra.mxu0 0.0
          %1567 = vmatprep.subr.mxu0 0.0
          %1568 = vmatpush1.msra.mxu0 0.0
          %1569 = vmatprep.subr.mxu0 0.0
          %1570 = vmatpush1.msra.mxu0 0.0
          %1571 = vmatprep.subr.mxu0 0.0
          %1572 = vmatpush1.msra.mxu0 0.0
          %1573 = vmatprep.subr.mxu0 0.0
          %1574 = vmatpush1.msra.mxu0 0.0
          %1575 = vmatprep.subr.mxu0 0.0
          %1576 = vmatpush1.msra.mxu0 0.0
          %1577 = vmatprep.subr.mxu0 0.0
          %1578 = vmatpush1.msra.mxu0 0.0
          %1579 = vmatprep.subr.mxu0 0.0
          %1580 = vmatpush1.msra.mxu0 0.0
          %1581 = vmatprep.subr.mxu0 0.0
          %1582 = vmatpush1.msra.mxu0 0.0
          %1583 = vmatprep.mubr.f32.mxu0 0.0
          %1584 = vmatmul.mubr.f32.gmra.mrb[0].mxu0 %v1517
          %v1585 = vpop.f32.mrb[0].mxu0
          %v1586 = vadd.f32 0.0, %v1585
          %v1587 = vpop.f32.mrb[0].mxu0
          %1588 = vdwg.mxu0
          %v1589 = vadd.f32 %v1505, %v1586
          %v1590 = vld [vmem:[%s5] sm:$0x1]
          %v1592 = vlaneseq
          %v1593 = vshrl.u32 %v1592, 7
          %v1594 = vsub.s32 0, %v1593
          %v1595 = vrot.slane %v1590, %v1594
          %v1597 = vadd.f32 %v1589, %v1595
          %vm1598 = vcmask 261120
          %1599 = vst.msk [vmem:[%s396] sm:$0xff] %vm1598, %v1597
        $region72: #{tpu_custom_call.1} parent=43 // pred_fallthru
          _
        %s1600 = sand.u32 %s203, 1
        %s1601 = scalar_lea.sflag [#allocation8], %s1600
        %s1602 = sand.u32 %s203, 1
        %s1603 = smul.addr %s1602, 8
        %s1604 = scalar_lea.vmem [#allocation15], %s1603
        // Predicated region
        $region73: #{tpu_custom_call.1} parent=43 // pred_check
          %p1605 = pneg %p213
        $region74: #{tpu_custom_call.1} parent=43 // pred_check_branch
          %1607 = sbr.rel (%p1605) target = $region76
        $region75: #{tpu_custom_call.1} parent=43 // pred_region
          %s1609 = ssub.s32 128, 128
          %1610 = vsyncadd %s1601, %s1609
          %s1611 = sadd.s32 %s33, %s32
          %s1612 = smul.addr %s1611, 128
          %s1613 = scalar_lea.hbm %s6, %s1612
          %s1615 = sshll.u32 %s1604, 4
          %s1616 = int_to_ptr.vmem [resolvable:$true] %s1615
          %1618 = dma.vmem_to_hbm [thread:$0]  %s1616, 128, %s1613, %s1601
        $region76: #{tpu_custom_call.1} parent=43 // pred_fallthru
          _
      $region44: #{tpu_custom_call.1} parent=5 // pred_fallthru
        _
      %p1619 = scmp.le.s32.totalorder 2, %s22
      // Predicated region
      $region77: #{tpu_custom_call.1} parent=5 // pred_check
        %p1620 = pneg %p1619
      $region78: #{tpu_custom_call.1} parent=5 // pred_check_branch
        %1622 = sbr.rel (%p1620) target = $region80
      $region79: #{tpu_custom_call.1} parent=5 // pred_region
        %s1623 = ssub.s32 %s22, 2
        // Predicated region
        $region81: #{tpu_custom_call.1} parent=79 // pred_check
          %p1624 = pneg %p219
        $region82: #{tpu_custom_call.1} parent=79 // pred_check_branch
          %1626 = sbr.rel (%p1624) target = $region84
        $region83: #{tpu_custom_call.1} parent=79 // pred_region
          %s1627 = sand.u32 %s204, 1
          %s1628 = scalar_lea.sflag [#allocation8], %s1627
          %s1629 = sand.u32 %s204, 1
          %s1630 = smul.addr %s1629, 8
          %s1631 = scalar_lea.vmem [#allocation15], %s1630
          %1632 = dma.done %s1628, 128
        $region84: #{tpu_custom_call.1} parent=79 // pred_fallthru
          _
      $region80: #{tpu_custom_call.1} parent=5 // pred_fallthru
        _
    $region6: #{tpu_custom_call.1} parent=1 // loop_footer
      %s26 = sadd.s32 1, %s22
    $region7: #{tpu_custom_call.1} parent=1 // loop_footer_branch
      %21 = sbr.rel target = $region3
    $region8: #{tpu_custom_call.1} parent=1 // loop_exit
      _
    %1633 = vsyncpa [#allocation7], 1
    %s1634 = scalar_lea.sflag [#allocation7], 1
    %1635 = vsyncpa %s1634, 1
    %1636 = vsyncpa [#allocation10], 1
    %s1637 = scalar_lea.sflag [#allocation10], 1
    %1638 = vsyncpa %s1637, 1
    %1639 = vsyncpa [#allocation13], 1
    %1640 = vsyncpa [#allocation8], 1
    %s1641 = scalar_lea.sflag [#allocation8], 1
    %1642 = vsyncpa %s1641, 1

</llo_original>
